<compile_context>
chip_gen: v6e
topology: v6e:2x2x1
jax: 0.10.0
libtpu: 0.0.40
codegen_flags: <defaults>
</compile_context>

<pallas_src>
import functools

import jax
import jax.numpy as jnp
import numpy as np
from jax import lax
from jax.experimental import pallas as pl
from jax.experimental.pallas import tpu as pltpu


# ------------------------------ fused kernel --------------------------------
def _lstm_gen_kernel(src_ref, enc_wih_ref, enc_whh_ref, enc_b_ref,
                     dec_whh_ref, dec_b_ref, dec_wf_ref, dec_bf_ref,
                     fc_w_ref, fc_b_ref,
                     out_ref, gx_ref, hall_ref, *, B, T):
    # src_ref:   (T*B, Din)  bf16   time-major, flattened source
    # enc_wih:   (Din, 4H)   bf16   enc_whh: (H, 4H) bf16   enc_b: (1, 4H) f32
    # dec_whh:   (H, 4H)     bf16   dec_b:   (1, 4H) f32    (for the peeled t=0)
    # dec_wf:    (H, 4H)     bf16   dec_bf:  (1, 4H) f32    (fused FC feedback, t>=1)
    # fc_w:      (H, Dout)   bf16   fc_b:    (1, Dout) f32
    # out_ref:   (T*B, Dout) f32    written once at the end
    # gx_ref:    (T*B, 4H)   f32    scratch: precomputed encoder input gates
    # hall_ref:  (T*B, H)    f32    scratch: decoder hidden states
    H = enc_whh_ref.shape[0]
    bf16 = jnp.bfloat16
    f32 = jnp.float32

    def gate_update(gates, c):
        # Two full-vreg EUP passes over the (B, 4H) tile, then pick i/f/g/o
        # (PyTorch gate order).
        sig = jax.nn.sigmoid(gates)
        th = jnp.tanh(gates)
        i = sig[:, 0:H]
        f = sig[:, H:2 * H]
        g = th[:, 2 * H:3 * H]
        o = sig[:, 3 * H:4 * H]
        c_new = f * c + i * g
        h_new = o * jnp.tanh(c_new)
        return h_new, c_new

    # ---------------- encoder: (h, c) = LSTM(source) ----------------
    # Hoisted input projection: one (T*B, Din) x (Din, 4H) matmul, bias folded.
    gx_ref[...] = (jnp.dot(src_ref[...], enc_wih_ref[...],
                           preferred_element_type=f32)
                   + enc_b_ref[...])

    enc_whh = enc_whh_ref[...]                       # bf16, hoisted

    def enc_body(t, carry):
        h, c = carry
        row = pl.multiple_of(t * B, B)
        gates = gx_ref[pl.ds(row, B), :] + jnp.dot(
            h.astype(bf16), enc_whh, preferred_element_type=f32)
        return gate_update(gates, c)

    h0 = jnp.zeros((B, H), f32)
    c0 = jnp.zeros((B, H), f32)
    h, c = lax.fori_loop(0, T, enc_body, (h0, c0), unroll=True)

    # ---------------- decoder: autoregressive, x_0 = 0 ----------------
    # Decoder weights loaded only now (keeps them dead across the encoder loop).
    dec_wf = dec_wf_ref[...]                                     # bf16 (H, 4H)
    dec_bf = jnp.broadcast_to(dec_bf_ref[...], (B, 4 * H))       # hoist broadcast

    # Peeled step t = 0: x_0 = zeros  =>  gates = h_enc @ dec_whh + dec_b.
    gates0 = jnp.dot(h.astype(bf16), dec_whh_ref[...],
                     preferred_element_type=f32) + dec_b_ref[...]
    h, c = gate_update(gates0, c)
    hall_ref[pl.ds(0, B), :] = h

    # Steps t >= 1: x_t = h @ fc_w + fc_b is folded into the recurrence, so
    # each step is a single (B, H) x (H, 4H) MXU push.
    def dec_body(t, carry):
        h, c = carry
        gates = jnp.dot(h.astype(bf16), dec_wf,
                        preferred_element_type=f32) + dec_bf
        h_new, c_new = gate_update(gates, c)
        hall_ref[pl.ds(pl.multiple_of(t * B, B), B), :] = h_new
        return (h_new, c_new)

    lax.fori_loop(1, T, dec_body, (h, c), unroll=True)

    # Deferred output projection: one (T*B, H) x (H, Dout) matmul + one store.
    y = jnp.dot(hall_ref[...].astype(bf16), fc_w_ref[...],
                preferred_element_type=f32) + fc_b_ref[...]
    out_ref[...] = y


# ------------------------------ wrapper --------------------------------------
def _lstm_gen_forward(source, target, params):
    """source: [B, T, D_in], target: [B, T, D_out] (batch-first, PyTorch conv.).
    Eval-mode forward of LSTM_GEN (no teacher forcing)."""
    B, T, Din = source.shape
    Dout = target.shape[-1]
    H = params["enc_whh_t"].shape[0]
    f32, bf16 = jnp.float32, jnp.bfloat16

    # Time-major + flattened source for the one-shot encoder input projection.
    src2d = jnp.transpose(source, (1, 0, 2)).reshape(T * B, Din).astype(bf16)

    # Fused decoder recurrence (t >= 1): x_t = h @ fc_w + fc_b  =>
    #   gates_t = h @ (fc_w @ dec_wih + dec_whh) + (fc_b @ dec_wih + dec_b)
    w_dec_fused = params["fc_w_t"] @ params["dec_wih_t"] + params["dec_whh_t"]
    b_dec_fused = params["fc_b"] @ params["dec_wih_t"] + params["dec_b"]

    kernel = functools.partial(_lstm_gen_kernel, B=B, T=T)

    out2d = pl.pallas_call(
        kernel,
        out_shape=jax.ShapeDtypeStruct((T * B, Dout), f32),
        in_specs=[pl.BlockSpec(memory_space=pltpu.MemorySpace.VMEM)] * 10,
        out_specs=pl.BlockSpec(memory_space=pltpu.MemorySpace.VMEM),
        scratch_shapes=[pltpu.VMEM((T * B, 4 * H), f32),   # encoder input gates
                        pltpu.VMEM((T * B, H), f32)],      # decoder hidden states
    )(src2d,
      params["enc_wih_t"].astype(bf16), params["enc_whh_t"].astype(bf16),
      params["enc_b"],
      params["dec_whh_t"].astype(bf16), params["dec_b"],
      w_dec_fused.astype(bf16), b_dec_fused,
      params["fc_w_t"].astype(bf16), params["fc_b"])

    return jnp.transpose(out2d.reshape(T, B, Dout), (1, 0, 2))   # (B, T, Dout)


lstm_gen_forward = jax.jit(_lstm_gen_forward)


# ------------------------------ reference (plain JAX, f32) -------------------
def _ref_cell(x, h, c, wih_t, whh_t, b):
    H = h.shape[-1]
    gates = x @ wih_t + h @ whh_t + b
    i = jax.nn.sigmoid(gates[:, 0:H])
    f = jax.nn.sigmoid(gates[:, H:2 * H])
    g = jnp.tanh(gates[:, 2 * H:3 * H])
    o = jax.nn.sigmoid(gates[:, 3 * H:4 * H])
    c_new = f * c + i * g
    h_new = o * jnp.tanh(c_new)
    return h_new, c_new


def lstm_gen_reference(source, target, params):
    B, T, _ = source.shape
    H = params["enc_whh_t"].shape[0]
    h = jnp.zeros((B, H), jnp.float32)
    c = jnp.zeros((B, H), jnp.float32)
    for t in range(T):
        h, c = _ref_cell(source[:, t, :], h, c,
                         params["enc_wih_t"], params["enc_whh_t"], params["enc_b"])
    x = jnp.zeros_like(target[:, 0, :])
    outs = []
    for t in range(T):
        h, c = _ref_cell(x, h, c,
                         params["dec_wih_t"], params["dec_whh_t"], params["dec_b"])
        x = h @ params["fc_w_t"] + params["fc_b"]
        outs.append(x)
    return jnp.stack(outs, axis=1)


# ------------------------------ main -----------------------------------------
if __name__ == "__main__":
    B, T, D_IN, H, D_OUT = 8, 8, 16, 32, 16

    key = jax.random.PRNGKey(0)
    ks = jax.random.split(key, 10)
    k = 1.0 / np.sqrt(H)

    def u(kk, shape):
        return jax.random.uniform(kk, shape, jnp.float32, -k, k)

    # Weights stored pre-transposed ([in, 4H] / [H, D_out]) for the kernel.
    params = {
        "enc_wih_t": u(ks[0], (D_IN, 4 * H)),
        "enc_whh_t": u(ks[1], (H, 4 * H)),
        "enc_b":     u(ks[2], (1, 4 * H)),       # b_ih + b_hh folded together
        "dec_wih_t": u(ks[3], (D_OUT, 4 * H)),
        "dec_whh_t": u(ks[4], (H, 4 * H)),
        "dec_b":     u(ks[5], (1, 4 * H)),
        "fc_w_t":    u(ks[6], (H, D_OUT)),
        "fc_b":      u(ks[7], (1, D_OUT)),
    }

    source = jax.random.normal(ks[8], (B, T, D_IN), jnp.float32)
    target = jax.random.normal(ks[9], (B, T, D_OUT), jnp.float32)

    out = jax.block_until_ready(lstm_gen_forward(source, target, params))
    ref = jax.block_until_ready(lstm_gen_reference(source, target, params))

    assert out.shape == target.shape, (out.shape, target.shape)
    # Kernel runs matmul operands in bf16 (f32 accumulation/state); tolerance
    # vs. the pure-f32 reference is relaxed accordingly.
    np.testing.assert_allclose(np.asarray(out), np.asarray(ref),
                               rtol=2e-2, atol=2e-2)
    # TODO(synk): teacher forcing (self.training branch with random.random())
    # is a host-side RNG control-flow decision; only eval-mode forward is lowered.
    print("KERNEL_OK")
</pallas_src>

<mosaic_0001>
module attributes {stable_mosaic.version = 11 : i64} {
  func.func @_lstm_gen_kernel(%arg0: memref<64x16xbf16, #tpu.memory_space<vmem>>, %arg1: memref<16x128xbf16, #tpu.memory_space<vmem>>, %arg2: memref<32x128xbf16, #tpu.memory_space<vmem>>, %arg3: memref<1x128xf32, #tpu.memory_space<vmem>>, %arg4: memref<32x128xbf16, #tpu.memory_space<vmem>>, %arg5: memref<1x128xf32, #tpu.memory_space<vmem>>, %arg6: memref<32x128xbf16, #tpu.memory_space<vmem>>, %arg7: memref<1x128xf32, #tpu.memory_space<vmem>>, %arg8: memref<32x16xbf16, #tpu.memory_space<vmem>>, %arg9: memref<1x16xf32, #tpu.memory_space<vmem>>, %arg10: memref<64x16xf32, #tpu.memory_space<vmem>>, %arg11: memref<64x128xf32, #tpu.memory_space<vmem>>, %arg12: memref<64x32xf32, #tpu.memory_space<vmem>>) attributes {dimension_semantics = [], scalar_prefetch = 0 : i64, scratch_operands = 2 : i64, tpu.core_type = #tpu.core_type<tc>} {
    %c0 = arith.constant 0 : index
    %c0_0 = arith.constant 0 : index
    %0 = vector.load %arg0[%c0, %c0_0] : memref<64x16xbf16, #tpu.memory_space<vmem>>, vector<64x16xbf16>
    %c0_1 = arith.constant 0 : index
    %c0_2 = arith.constant 0 : index
    %1 = vector.load %arg1[%c0_1, %c0_2] : memref<16x128xbf16, #tpu.memory_space<vmem>>, vector<16x128xbf16>
    %cst = arith.constant dense<0.000000e+00> : vector<64x128xf32>
    %2 = tpu.matmul %0, %1, %cst {dimension_numbers = #tpu.dot_dimension_numbers<[1], [0], [0], [1], [0, 0, 1, 1], [], []>} : vector<64x16xbf16>, vector<16x128xbf16>, vector<64x128xf32> -> vector<64x128xf32>
    %c0_3 = arith.constant 0 : index
    %c0_4 = arith.constant 0 : index
    %3 = vector.load %arg3[%c0_3, %c0_4] : memref<1x128xf32, #tpu.memory_space<vmem>>, vector<1x128xf32>
    %4 = vector.broadcast %3 : vector<1x128xf32> to vector<64x128xf32>
    %5 = arith.addf %2, %4 : vector<64x128xf32>
    %c0_5 = arith.constant 0 : index
    %c0_6 = arith.constant 0 : index
    %6 = vector.load %arg11[%c0_5, %c0_6] : memref<64x128xf32, #tpu.memory_space<vmem>>, vector<64x128xf32>
    tpu.vector_store %arg11[%c0_5, %c0_6], %5 {strides = array<i32>} : memref<64x128xf32, #tpu.memory_space<vmem>>, vector<64x128xf32>,
    %c0_7 = arith.constant 0 : index
    %c0_8 = arith.constant 0 : index
    %7 = vector.load %arg2[%c0_7, %c0_8] : memref<32x128xbf16, #tpu.memory_space<vmem>>, vector<32x128xbf16>
    %cst_9 = arith.constant 0.000000e+00 : f32
    %8 = vector.broadcast %cst_9 : f32 to vector<8x32xf32>
    %cst_10 = arith.constant 0.000000e+00 : f32
    %9 = vector.broadcast %cst_10 : f32 to vector<8x32xf32>
    %c0_i32 = arith.constant 0 : i32
    %c8_i32 = arith.constant 8 : i32
    %10 = arith.muli %c0_i32, %c8_i32 : i32
    %11 = tpu.assume_multiple %10, 8 : i32
    %12 = arith.index_cast %11 : i32 to index
    %c0_11 = arith.constant 0 : index
    %13 = vector.load %arg11[%12, %c0_11] : memref<64x128xf32, #tpu.memory_space<vmem>>, vector<8x128xf32>
    %14 = arith.truncf %8 : vector<8x32xf32> to vector<8x32xbf16>
    %cst_12 = arith.constant dense<0.000000e+00> : vector<8x128xf32>
    %15 = tpu.matmul %14, %7, %cst_12 {dimension_numbers = #tpu.dot_dimension_numbers<[1], [0], [0], [1], [0, 0, 1, 1], [], []>} : vector<8x32xbf16>, vector<32x128xbf16>, vector<8x128xf32> -> vector<8x128xf32>
    %16 = arith.addf %13, %15 : vector<8x128xf32>
    %17 = arith.negf %16 : vector<8x128xf32>
    %18 = math.exp %17 : vector<8x128xf32>
    %cst_13 = arith.constant 1.000000e+00 : f32
    %19 = vector.broadcast %cst_13 : f32 to vector<8x128xf32>
    %20 = arith.addf %19, %18 : vector<8x128xf32>
    %21 = arith.divf %19, %20 : vector<8x128xf32>
    %22 = math.tanh %16 : vector<8x128xf32>
    %23 = vector.extract_strided_slice %21 {offsets = [0, 0], sizes = [8, 32], strides = [1, 1]} : vector<8x128xf32> to vector<8x32xf32>
    %24 = vector.extract_strided_slice %21 {offsets = [0, 32], sizes = [8, 32], strides = [1, 1]} : vector<8x128xf32> to vector<8x32xf32>
    %25 = vector.extract_strided_slice %22 {offsets = [0, 64], sizes = [8, 32], strides = [1, 1]} : vector<8x128xf32> to vector<8x32xf32>
    %26 = vector.extract_strided_slice %21 {offsets = [0, 96], sizes = [8, 32], strides = [1, 1]} : vector<8x128xf32> to vector<8x32xf32>
    %27 = arith.mulf %24, %9 : vector<8x32xf32>
    %28 = arith.mulf %23, %25 : vector<8x32xf32>
    %29 = arith.addf %27, %28 : vector<8x32xf32>
    %30 = math.tanh %29 : vector<8x32xf32>
    %31 = arith.mulf %26, %30 : vector<8x32xf32>
    %c1_i32 = arith.constant 1 : i32
    %c8_i32_14 = arith.constant 8 : i32
    %32 = arith.muli %c1_i32, %c8_i32_14 : i32
    %33 = tpu.assume_multiple %32, 8 : i32
    %34 = arith.index_cast %33 : i32 to index
    %c0_15 = arith.constant 0 : index
    %35 = vector.load %arg11[%34, %c0_15] : memref<64x128xf32, #tpu.memory_space<vmem>>, vector<8x128xf32>
    %36 = arith.truncf %31 : vector<8x32xf32> to vector<8x32xbf16>
    %cst_16 = arith.constant dense<0.000000e+00> : vector<8x128xf32>
    %37 = tpu.matmul %36, %7, %cst_16 {dimension_numbers = #tpu.dot_dimension_numbers<[1], [0], [0], [1], [0, 0, 1, 1], [], []>} : vector<8x32xbf16>, vector<32x128xbf16>, vector<8x128xf32> -> vector<8x128xf32>
    %38 = arith.addf %35, %37 : vector<8x128xf32>
    %39 = arith.negf %38 : vector<8x128xf32>
    %40 = math.exp %39 : vector<8x128xf32>
    %cst_17 = arith.constant 1.000000e+00 : f32
    %41 = vector.broadcast %cst_17 : f32 to vector<8x128xf32>
    %42 = arith.addf %41, %40 : vector<8x128xf32>
    %43 = arith.divf %41, %42 : vector<8x128xf32>
    %44 = math.tanh %38 : vector<8x128xf32>
    %45 = vector.extract_strided_slice %43 {offsets = [0, 0], sizes = [8, 32], strides = [1, 1]} : vector<8x128xf32> to vector<8x32xf32>
    %46 = vector.extract_strided_slice %43 {offsets = [0, 32], sizes = [8, 32], strides = [1, 1]} : vector<8x128xf32> to vector<8x32xf32>
    %47 = vector.extract_strided_slice %44 {offsets = [0, 64], sizes = [8, 32], strides = [1, 1]} : vector<8x128xf32> to vector<8x32xf32>
    %48 = vector.extract_strided_slice %43 {offsets = [0, 96], sizes = [8, 32], strides = [1, 1]} : vector<8x128xf32> to vector<8x32xf32>
    %49 = arith.mulf %46, %29 : vector<8x32xf32>
    %50 = arith.mulf %45, %47 : vector<8x32xf32>
    %51 = arith.addf %49, %50 : vector<8x32xf32>
    %52 = math.tanh %51 : vector<8x32xf32>
    %53 = arith.mulf %48, %52 : vector<8x32xf32>
    %c2_i32 = arith.constant 2 : i32
    %c8_i32_18 = arith.constant 8 : i32
    %54 = arith.muli %c2_i32, %c8_i32_18 : i32
    %55 = tpu.assume_multiple %54, 8 : i32
    %56 = arith.index_cast %55 : i32 to index
    %c0_19 = arith.constant 0 : index
    %57 = vector.load %arg11[%56, %c0_19] : memref<64x128xf32, #tpu.memory_space<vmem>>, vector<8x128xf32>
    %58 = arith.truncf %53 : vector<8x32xf32> to vector<8x32xbf16>
    %cst_20 = arith.constant dense<0.000000e+00> : vector<8x128xf32>
    %59 = tpu.matmul %58, %7, %cst_20 {dimension_numbers = #tpu.dot_dimension_numbers<[1], [0], [0], [1], [0, 0, 1, 1], [], []>} : vector<8x32xbf16>, vector<32x128xbf16>, vector<8x128xf32> -> vector<8x128xf32>
    %60 = arith.addf %57, %59 : vector<8x128xf32>
    %61 = arith.negf %60 : vector<8x128xf32>
    %62 = math.exp %61 : vector<8x128xf32>
    %cst_21 = arith.constant 1.000000e+00 : f32
    %63 = vector.broadcast %cst_21 : f32 to vector<8x128xf32>
    %64 = arith.addf %63, %62 : vector<8x128xf32>
    %65 = arith.divf %63, %64 : vector<8x128xf32>
    %66 = math.tanh %60 : vector<8x128xf32>
    %67 = vector.extract_strided_slice %65 {offsets = [0, 0], sizes = [8, 32], strides = [1, 1]} : vector<8x128xf32> to vector<8x32xf32>
    %68 = vector.extract_strided_slice %65 {offsets = [0, 32], sizes = [8, 32], strides = [1, 1]} : vector<8x128xf32> to vector<8x32xf32>
    %69 = vector.extract_strided_slice %66 {offsets = [0, 64], sizes = [8, 32], strides = [1, 1]} : vector<8x128xf32> to vector<8x32xf32>
    %70 = vector.extract_strided_slice %65 {offsets = [0, 96], sizes = [8, 32], strides = [1, 1]} : vector<8x128xf32> to vector<8x32xf32>
    %71 = arith.mulf %68, %51 : vector<8x32xf32>
    %72 = arith.mulf %67, %69 : vector<8x32xf32>
    %73 = arith.addf %71, %72 : vector<8x32xf32>
    %74 = math.tanh %73 : vector<8x32xf32>
    %75 = arith.mulf %70, %74 : vector<8x32xf32>
    %c3_i32 = arith.constant 3 : i32
    %c8_i32_22 = arith.constant 8 : i32
    %76 = arith.muli %c3_i32, %c8_i32_22 : i32
    %77 = tpu.assume_multiple %76, 8 : i32
    %78 = arith.index_cast %77 : i32 to index
    %c0_23 = arith.constant 0 : index
    %79 = vector.load %arg11[%78, %c0_23] : memref<64x128xf32, #tpu.memory_space<vmem>>, vector<8x128xf32>
    %80 = arith.truncf %75 : vector<8x32xf32> to vector<8x32xbf16>
    %cst_24 = arith.constant dense<0.000000e+00> : vector<8x128xf32>
    %81 = tpu.matmul %80, %7, %cst_24 {dimension_numbers = #tpu.dot_dimension_numbers<[1], [0], [0], [1], [0, 0, 1, 1], [], []>} : vector<8x32xbf16>, vector<32x128xbf16>, vector<8x128xf32> -> vector<8x128xf32>
    %82 = arith.addf %79, %81 : vector<8x128xf32>
    %83 = arith.negf %82 : vector<8x128xf32>
    %84 = math.exp %83 : vector<8x128xf32>
    %cst_25 = arith.constant 1.000000e+00 : f32
    %85 = vector.broadcast %cst_25 : f32 to vector<8x128xf32>
    %86 = arith.addf %85, %84 : vector<8x128xf32>
    %87 = arith.divf %85, %86 : vector<8x128xf32>
    %88 = math.tanh %82 : vector<8x128xf32>
    %89 = vector.extract_strided_slice %87 {offsets = [0, 0], sizes = [8, 32], strides = [1, 1]} : vector<8x128xf32> to vector<8x32xf32>
    %90 = vector.extract_strided_slice %87 {offsets = [0, 32], sizes = [8, 32], strides = [1, 1]} : vector<8x128xf32> to vector<8x32xf32>
    %91 = vector.extract_strided_slice %88 {offsets = [0, 64], sizes = [8, 32], strides = [1, 1]} : vector<8x128xf32> to vector<8x32xf32>
    %92 = vector.extract_strided_slice %87 {offsets = [0, 96], sizes = [8, 32], strides = [1, 1]} : vector<8x128xf32> to vector<8x32xf32>
    %93 = arith.mulf %90, %73 : vector<8x32xf32>
    %94 = arith.mulf %89, %91 : vector<8x32xf32>
    %95 = arith.addf %93, %94 : vector<8x32xf32>
    %96 = math.tanh %95 : vector<8x32xf32>
    %97 = arith.mulf %92, %96 : vector<8x32xf32>
    %c4_i32 = arith.constant 4 : i32
    %c8_i32_26 = arith.constant 8 : i32
    %98 = arith.muli %c4_i32, %c8_i32_26 : i32
    %99 = tpu.assume_multiple %98, 8 : i32
    %100 = arith.index_cast %99 : i32 to index
    %c0_27 = arith.constant 0 : index
    %101 = vector.load %arg11[%100, %c0_27] : memref<64x128xf32, #tpu.memory_space<vmem>>, vector<8x128xf32>
    %102 = arith.truncf %97 : vector<8x32xf32> to vector<8x32xbf16>
    %cst_28 = arith.constant dense<0.000000e+00> : vector<8x128xf32>
    %103 = tpu.matmul %102, %7, %cst_28 {dimension_numbers = #tpu.dot_dimension_numbers<[1], [0], [0], [1], [0, 0, 1, 1], [], []>} : vector<8x32xbf16>, vector<32x128xbf16>, vector<8x128xf32> -> vector<8x128xf32>
    %104 = arith.addf %101, %103 : vector<8x128xf32>
    %105 = arith.negf %104 : vector<8x128xf32>
    %106 = math.exp %105 : vector<8x128xf32>
    %cst_29 = arith.constant 1.000000e+00 : f32
    %107 = vector.broadcast %cst_29 : f32 to vector<8x128xf32>
    %108 = arith.addf %107, %106 : vector<8x128xf32>
    %109 = arith.divf %107, %108 : vector<8x128xf32>
    %110 = math.tanh %104 : vector<8x128xf32>
    %111 = vector.extract_strided_slice %109 {offsets = [0, 0], sizes = [8, 32], strides = [1, 1]} : vector<8x128xf32> to vector<8x32xf32>
    %112 = vector.extract_strided_slice %109 {offsets = [0, 32], sizes = [8, 32], strides = [1, 1]} : vector<8x128xf32> to vector<8x32xf32>
    %113 = vector.extract_strided_slice %110 {offsets = [0, 64], sizes = [8, 32], strides = [1, 1]} : vector<8x128xf32> to vector<8x32xf32>
    %114 = vector.extract_strided_slice %109 {offsets = [0, 96], sizes = [8, 32], strides = [1, 1]} : vector<8x128xf32> to vector<8x32xf32>
    %115 = arith.mulf %112, %95 : vector<8x32xf32>
    %116 = arith.mulf %111, %113 : vector<8x32xf32>
    %117 = arith.addf %115, %116 : vector<8x32xf32>
    %118 = math.tanh %117 : vector<8x32xf32>
    %119 = arith.mulf %114, %118 : vector<8x32xf32>
    %c5_i32 = arith.constant 5 : i32
    %c8_i32_30 = arith.constant 8 : i32
    %120 = arith.muli %c5_i32, %c8_i32_30 : i32
    %121 = tpu.assume_multiple %120, 8 : i32
    %122 = arith.index_cast %121 : i32 to index
    %c0_31 = arith.constant 0 : index
    %123 = vector.load %arg11[%122, %c0_31] : memref<64x128xf32, #tpu.memory_space<vmem>>, vector<8x128xf32>
    %124 = arith.truncf %119 : vector<8x32xf32> to vector<8x32xbf16>
    %cst_32 = arith.constant dense<0.000000e+00> : vector<8x128xf32>
    %125 = tpu.matmul %124, %7, %cst_32 {dimension_numbers = #tpu.dot_dimension_numbers<[1], [0], [0], [1], [0, 0, 1, 1], [], []>} : vector<8x32xbf16>, vector<32x128xbf16>, vector<8x128xf32> -> vector<8x128xf32>
    %126 = arith.addf %123, %125 : vector<8x128xf32>
    %127 = arith.negf %126 : vector<8x128xf32>
    %128 = math.exp %127 : vector<8x128xf32>
    %cst_33 = arith.constant 1.000000e+00 : f32
    %129 = vector.broadcast %cst_33 : f32 to vector<8x128xf32>
    %130 = arith.addf %129, %128 : vector<8x128xf32>
    %131 = arith.divf %129, %130 : vector<8x128xf32>
    %132 = math.tanh %126 : vector<8x128xf32>
    %133 = vector.extract_strided_slice %131 {offsets = [0, 0], sizes = [8, 32], strides = [1, 1]} : vector<8x128xf32> to vector<8x32xf32>
    %134 = vector.extract_strided_slice %131 {offsets = [0, 32], sizes = [8, 32], strides = [1, 1]} : vector<8x128xf32> to vector<8x32xf32>
    %135 = vector.extract_strided_slice %132 {offsets = [0, 64], sizes = [8, 32], strides = [1, 1]} : vector<8x128xf32> to vector<8x32xf32>
    %136 = vector.extract_strided_slice %131 {offsets = [0, 96], sizes = [8, 32], strides = [1, 1]} : vector<8x128xf32> to vector<8x32xf32>
    %137 = arith.mulf %134, %117 : vector<8x32xf32>
    %138 = arith.mulf %133, %135 : vector<8x32xf32>
    %139 = arith.addf %137, %138 : vector<8x32xf32>
    %140 = math.tanh %139 : vector<8x32xf32>
    %141 = arith.mulf %136, %140 : vector<8x32xf32>
    %c6_i32 = arith.constant 6 : i32
    %c8_i32_34 = arith.constant 8 : i32
    %142 = arith.muli %c6_i32, %c8_i32_34 : i32
    %143 = tpu.assume_multiple %142, 8 : i32
    %144 = arith.index_cast %143 : i32 to index
    %c0_35 = arith.constant 0 : index
    %145 = vector.load %arg11[%144, %c0_35] : memref<64x128xf32, #tpu.memory_space<vmem>>, vector<8x128xf32>
    %146 = arith.truncf %141 : vector<8x32xf32> to vector<8x32xbf16>
    %cst_36 = arith.constant dense<0.000000e+00> : vector<8x128xf32>
    %147 = tpu.matmul %146, %7, %cst_36 {dimension_numbers = #tpu.dot_dimension_numbers<[1], [0], [0], [1], [0, 0, 1, 1], [], []>} : vector<8x32xbf16>, vector<32x128xbf16>, vector<8x128xf32> -> vector<8x128xf32>
    %148 = arith.addf %145, %147 : vector<8x128xf32>
    %149 = arith.negf %148 : vector<8x128xf32>
    %150 = math.exp %149 : vector<8x128xf32>
    %cst_37 = arith.constant 1.000000e+00 : f32
    %151 = vector.broadcast %cst_37 : f32 to vector<8x128xf32>
    %152 = arith.addf %151, %150 : vector<8x128xf32>
    %153 = arith.divf %151, %152 : vector<8x128xf32>
    %154 = math.tanh %148 : vector<8x128xf32>
    %155 = vector.extract_strided_slice %153 {offsets = [0, 0], sizes = [8, 32], strides = [1, 1]} : vector<8x128xf32> to vector<8x32xf32>
    %156 = vector.extract_strided_slice %153 {offsets = [0, 32], sizes = [8, 32], strides = [1, 1]} : vector<8x128xf32> to vector<8x32xf32>
    %157 = vector.extract_strided_slice %154 {offsets = [0, 64], sizes = [8, 32], strides = [1, 1]} : vector<8x128xf32> to vector<8x32xf32>
    %158 = vector.extract_strided_slice %153 {offsets = [0, 96], sizes = [8, 32], strides = [1, 1]} : vector<8x128xf32> to vector<8x32xf32>
    %159 = arith.mulf %156, %139 : vector<8x32xf32>
    %160 = arith.mulf %155, %157 : vector<8x32xf32>
    %161 = arith.addf %159, %160 : vector<8x32xf32>
    %162 = math.tanh %161 : vector<8x32xf32>
    %163 = arith.mulf %158, %162 : vector<8x32xf32>
    %c7_i32 = arith.constant 7 : i32
    %c8_i32_38 = arith.constant 8 : i32
    %164 = arith.muli %c7_i32, %c8_i32_38 : i32
    %165 = tpu.assume_multiple %164, 8 : i32
    %166 = arith.index_cast %165 : i32 to index
    %c0_39 = arith.constant 0 : index
    %167 = vector.load %arg11[%166, %c0_39] : memref<64x128xf32, #tpu.memory_space<vmem>>, vector<8x128xf32>
    %168 = arith.truncf %163 : vector<8x32xf32> to vector<8x32xbf16>
    %cst_40 = arith.constant dense<0.000000e+00> : vector<8x128xf32>
    %169 = tpu.matmul %168, %7, %cst_40 {dimension_numbers = #tpu.dot_dimension_numbers<[1], [0], [0], [1], [0, 0, 1, 1], [], []>} : vector<8x32xbf16>, vector<32x128xbf16>, vector<8x128xf32> -> vector<8x128xf32>
    %170 = arith.addf %167, %169 : vector<8x128xf32>
    %171 = arith.negf %170 : vector<8x128xf32>
    %172 = math.exp %171 : vector<8x128xf32>
    %cst_41 = arith.constant 1.000000e+00 : f32
    %173 = vector.broadcast %cst_41 : f32 to vector<8x128xf32>
    %174 = arith.addf %173, %172 : vector<8x128xf32>
    %175 = arith.divf %173, %174 : vector<8x128xf32>
    %176 = math.tanh %170 : vector<8x128xf32>
    %177 = vector.extract_strided_slice %175 {offsets = [0, 0], sizes = [8, 32], strides = [1, 1]} : vector<8x128xf32> to vector<8x32xf32>
    %178 = vector.extract_strided_slice %175 {offsets = [0, 32], sizes = [8, 32], strides = [1, 1]} : vector<8x128xf32> to vector<8x32xf32>
    %179 = vector.extract_strided_slice %176 {offsets = [0, 64], sizes = [8, 32], strides = [1, 1]} : vector<8x128xf32> to vector<8x32xf32>
    %180 = vector.extract_strided_slice %175 {offsets = [0, 96], sizes = [8, 32], strides = [1, 1]} : vector<8x128xf32> to vector<8x32xf32>
    %181 = arith.mulf %178, %161 : vector<8x32xf32>
    %182 = arith.mulf %177, %179 : vector<8x32xf32>
    %183 = arith.addf %181, %182 : vector<8x32xf32>
    %184 = math.tanh %183 : vector<8x32xf32>
    %185 = arith.mulf %180, %184 : vector<8x32xf32>
    %c8_i32_42 = arith.constant 8 : i32
    %c0_43 = arith.constant 0 : index
    %c0_44 = arith.constant 0 : index
    %186 = vector.load %arg6[%c0_43, %c0_44] : memref<32x128xbf16, #tpu.memory_space<vmem>>, vector<32x128xbf16>
    %c0_45 = arith.constant 0 : index
    %c0_46 = arith.constant 0 : index
    %187 = vector.load %arg7[%c0_45, %c0_46] : memref<1x128xf32, #tpu.memory_space<vmem>>, vector<1x128xf32>
    %188 = vector.shape_cast %187 : vector<1x128xf32> to vector<1x128xf32>
    %189 = vector.broadcast %188 : vector<1x128xf32> to vector<8x128xf32>
    %190 = arith.truncf %185 : vector<8x32xf32> to vector<8x32xbf16>
    %c0_47 = arith.constant 0 : index
    %c0_48 = arith.constant 0 : index
    %191 = vector.load %arg4[%c0_47, %c0_48] : memref<32x128xbf16, #tpu.memory_space<vmem>>, vector<32x128xbf16>
    %cst_49 = arith.constant dense<0.000000e+00> : vector<8x128xf32>
    %192 = tpu.matmul %190, %191, %cst_49 {dimension_numbers = #tpu.dot_dimension_numbers<[1], [0], [0], [1], [0, 0, 1, 1], [], []>} : vector<8x32xbf16>, vector<32x128xbf16>, vector<8x128xf32> -> vector<8x128xf32>
    %c0_50 = arith.constant 0 : index
    %c0_51 = arith.constant 0 : index
    %193 = vector.load %arg5[%c0_50, %c0_51] : memref<1x128xf32, #tpu.memory_space<vmem>>, vector<1x128xf32>
    %194 = vector.broadcast %193 : vector<1x128xf32> to vector<8x128xf32>
    %195 = arith.addf %192, %194 : vector<8x128xf32>
    %196 = arith.negf %195 : vector<8x128xf32>
    %197 = math.exp %196 : vector<8x128xf32>
    %cst_52 = arith.constant 1.000000e+00 : f32
    %198 = vector.broadcast %cst_52 : f32 to vector<8x128xf32>
    %199 = arith.addf %198, %197 : vector<8x128xf32>
    %200 = arith.divf %198, %199 : vector<8x128xf32>
    %201 = math.tanh %195 : vector<8x128xf32>
    %202 = vector.extract_strided_slice %200 {offsets = [0, 0], sizes = [8, 32], strides = [1, 1]} : vector<8x128xf32> to vector<8x32xf32>
    %203 = vector.extract_strided_slice %200 {offsets = [0, 32], sizes = [8, 32], strides = [1, 1]} : vector<8x128xf32> to vector<8x32xf32>
    %204 = vector.extract_strided_slice %201 {offsets = [0, 64], sizes = [8, 32], strides = [1, 1]} : vector<8x128xf32> to vector<8x32xf32>
    %205 = vector.extract_strided_slice %200 {offsets = [0, 96], sizes = [8, 32], strides = [1, 1]} : vector<8x128xf32> to vector<8x32xf32>
    %206 = arith.mulf %203, %183 : vector<8x32xf32>
    %207 = arith.mulf %202, %204 : vector<8x32xf32>
    %208 = arith.addf %206, %207 : vector<8x32xf32>
    %209 = math.tanh %208 : vector<8x32xf32>
    %210 = arith.mulf %205, %209 : vector<8x32xf32>
    %c0_53 = arith.constant 0 : index
    %c0_54 = arith.constant 0 : index
    %211 = vector.load %arg12[%c0_53, %c0_54] : memref<64x32xf32, #tpu.memory_space<vmem>>, vector<8x32xf32>
    tpu.vector_store %arg12[%c0_53, %c0_54], %210 {strides = array<i32>} : memref<64x32xf32, #tpu.memory_space<vmem>>, vector<8x32xf32>,
    %c1_i32_55 = arith.constant 1 : i32
    %212 = arith.truncf %210 : vector<8x32xf32> to vector<8x32xbf16>
    %cst_56 = arith.constant dense<0.000000e+00> : vector<8x128xf32>
    %213 = tpu.matmul %212, %186, %cst_56 {dimension_numbers = #tpu.dot_dimension_numbers<[1], [0], [0], [1], [0, 0, 1, 1], [], []>} : vector<8x32xbf16>, vector<32x128xbf16>, vector<8x128xf32> -> vector<8x128xf32>
    %214 = arith.addf %213, %189 : vector<8x128xf32>
    %215 = arith.negf %214 : vector<8x128xf32>
    %216 = math.exp %215 : vector<8x128xf32>
    %cst_57 = arith.constant 1.000000e+00 : f32
    %217 = vector.broadcast %cst_57 : f32 to vector<8x128xf32>
    %218 = arith.addf %217, %216 : vector<8x128xf32>
    %219 = arith.divf %217, %218 : vector<8x128xf32>
    %220 = math.tanh %214 : vector<8x128xf32>
    %221 = vector.extract_strided_slice %219 {offsets = [0, 0], sizes = [8, 32], strides = [1, 1]} : vector<8x128xf32> to vector<8x32xf32>
    %222 = vector.extract_strided_slice %219 {offsets = [0, 32], sizes = [8, 32], strides = [1, 1]} : vector<8x128xf32> to vector<8x32xf32>
    %223 = vector.extract_strided_slice %220 {offsets = [0, 64], sizes = [8, 32], strides = [1, 1]} : vector<8x128xf32> to vector<8x32xf32>
    %224 = vector.extract_strided_slice %219 {offsets = [0, 96], sizes = [8, 32], strides = [1, 1]} : vector<8x128xf32> to vector<8x32xf32>
    %225 = arith.mulf %222, %208 : vector<8x32xf32>
    %226 = arith.mulf %221, %223 : vector<8x32xf32>
    %227 = arith.addf %225, %226 : vector<8x32xf32>
    %228 = math.tanh %227 : vector<8x32xf32>
    %229 = arith.mulf %224, %228 : vector<8x32xf32>
    %c8_i32_58 = arith.constant 8 : i32
    %230 = arith.muli %c1_i32_55, %c8_i32_58 : i32
    %231 = tpu.assume_multiple %230, 8 : i32
    %232 = arith.index_cast %231 : i32 to index
    %c0_59 = arith.constant 0 : index
    %233 = vector.load %arg12[%232, %c0_59] : memref<64x32xf32, #tpu.memory_space<vmem>>, vector<8x32xf32>
    tpu.vector_store %arg12[%232, %c0_59], %229 {strides = array<i32>} : memref<64x32xf32, #tpu.memory_space<vmem>>, vector<8x32xf32>,
    %c2_i32_60 = arith.constant 2 : i32
    %234 = arith.truncf %229 : vector<8x32xf32> to vector<8x32xbf16>
    %cst_61 = arith.constant dense<0.000000e+00> : vector<8x128xf32>
    %235 = tpu.matmul %234, %186, %cst_61 {dimension_numbers = #tpu.dot_dimension_numbers<[1], [0], [0], [1], [0, 0, 1, 1], [], []>} : vector<8x32xbf16>, vector<32x128xbf16>, vector<8x128xf32> -> vector<8x128xf32>
    %236 = arith.addf %235, %189 : vector<8x128xf32>
    %237 = arith.negf %236 : vector<8x128xf32>
    %238 = math.exp %237 : vector<8x128xf32>
    %cst_62 = arith.constant 1.000000e+00 : f32
    %239 = vector.broadcast %cst_62 : f32 to vector<8x128xf32>
    %240 = arith.addf %239, %238 : vector<8x128xf32>
    %241 = arith.divf %239, %240 : vector<8x128xf32>
    %242 = math.tanh %236 : vector<8x128xf32>
    %243 = vector.extract_strided_slice %241 {offsets = [0, 0], sizes = [8, 32], strides = [1, 1]} : vector<8x128xf32> to vector<8x32xf32>
    %244 = vector.extract_strided_slice %241 {offsets = [0, 32], sizes = [8, 32], strides = [1, 1]} : vector<8x128xf32> to vector<8x32xf32>
    %245 = vector.extract_strided_slice %242 {offsets = [0, 64], sizes = [8, 32], strides = [1, 1]} : vector<8x128xf32> to vector<8x32xf32>
    %246 = vector.extract_strided_slice %241 {offsets = [0, 96], sizes = [8, 32], strides = [1, 1]} : vector<8x128xf32> to vector<8x32xf32>
    %247 = arith.mulf %244, %227 : vector<8x32xf32>
    %248 = arith.mulf %243, %245 : vector<8x32xf32>
    %249 = arith.addf %247, %248 : vector<8x32xf32>
    %250 = math.tanh %249 : vector<8x32xf32>
    %251 = arith.mulf %246, %250 : vector<8x32xf32>
    %c8_i32_63 = arith.constant 8 : i32
    %252 = arith.muli %c2_i32_60, %c8_i32_63 : i32
    %253 = tpu.assume_multiple %252, 8 : i32
    %254 = arith.index_cast %253 : i32 to index
    %c0_64 = arith.constant 0 : index
    %255 = vector.load %arg12[%254, %c0_64] : memref<64x32xf32, #tpu.memory_space<vmem>>, vector<8x32xf32>
    tpu.vector_store %arg12[%254, %c0_64], %251 {strides = array<i32>} : memref<64x32xf32, #tpu.memory_space<vmem>>, vector<8x32xf32>,
    %c3_i32_65 = arith.constant 3 : i32
    %256 = arith.truncf %251 : vector<8x32xf32> to vector<8x32xbf16>
    %cst_66 = arith.constant dense<0.000000e+00> : vector<8x128xf32>
    %257 = tpu.matmul %256, %186, %cst_66 {dimension_numbers = #tpu.dot_dimension_numbers<[1], [0], [0], [1], [0, 0, 1, 1], [], []>} : vector<8x32xbf16>, vector<32x128xbf16>, vector<8x128xf32> -> vector<8x128xf32>
    %258 = arith.addf %257, %189 : vector<8x128xf32>
    %259 = arith.negf %258 : vector<8x128xf32>
    %260 = math.exp %259 : vector<8x128xf32>
    %cst_67 = arith.constant 1.000000e+00 : f32
    %261 = vector.broadcast %cst_67 : f32 to vector<8x128xf32>
    %262 = arith.addf %261, %260 : vector<8x128xf32>
    %263 = arith.divf %261, %262 : vector<8x128xf32>
    %264 = math.tanh %258 : vector<8x128xf32>
    %265 = vector.extract_strided_slice %263 {offsets = [0, 0], sizes = [8, 32], strides = [1, 1]} : vector<8x128xf32> to vector<8x32xf32>
    %266 = vector.extract_strided_slice %263 {offsets = [0, 32], sizes = [8, 32], strides = [1, 1]} : vector<8x128xf32> to vector<8x32xf32>
    %267 = vector.extract_strided_slice %264 {offsets = [0, 64], sizes = [8, 32], strides = [1, 1]} : vector<8x128xf32> to vector<8x32xf32>
    %268 = vector.extract_strided_slice %263 {offsets = [0, 96], sizes = [8, 32], strides = [1, 1]} : vector<8x128xf32> to vector<8x32xf32>
    %269 = arith.mulf %266, %249 : vector<8x32xf32>
    %270 = arith.mulf %265, %267 : vector<8x32xf32>
    %271 = arith.addf %269, %270 : vector<8x32xf32>
    %272 = math.tanh %271 : vector<8x32xf32>
    %273 = arith.mulf %268, %272 : vector<8x32xf32>
    %c8_i32_68 = arith.constant 8 : i32
    %274 = arith.muli %c3_i32_65, %c8_i32_68 : i32
    %275 = tpu.assume_multiple %274, 8 : i32
    %276 = arith.index_cast %275 : i32 to index
    %c0_69 = arith.constant 0 : index
    %277 = vector.load %arg12[%276, %c0_69] : memref<64x32xf32, #tpu.memory_space<vmem>>, vector<8x32xf32>
    tpu.vector_store %arg12[%276, %c0_69], %273 {strides = array<i32>} : memref<64x32xf32, #tpu.memory_space<vmem>>, vector<8x32xf32>,
    %c4_i32_70 = arith.constant 4 : i32
    %278 = arith.truncf %273 : vector<8x32xf32> to vector<8x32xbf16>
    %cst_71 = arith.constant dense<0.000000e+00> : vector<8x128xf32>
    %279 = tpu.matmul %278, %186, %cst_71 {dimension_numbers = #tpu.dot_dimension_numbers<[1], [0], [0], [1], [0, 0, 1, 1], [], []>} : vector<8x32xbf16>, vector<32x128xbf16>, vector<8x128xf32> -> vector<8x128xf32>
    %280 = arith.addf %279, %189 : vector<8x128xf32>
    %281 = arith.negf %280 : vector<8x128xf32>
    %282 = math.exp %281 : vector<8x128xf32>
    %cst_72 = arith.constant 1.000000e+00 : f32
    %283 = vector.broadcast %cst_72 : f32 to vector<8x128xf32>
    %284 = arith.addf %283, %282 : vector<8x128xf32>
    %285 = arith.divf %283, %284 : vector<8x128xf32>
    %286 = math.tanh %280 : vector<8x128xf32>
    %287 = vector.extract_strided_slice %285 {offsets = [0, 0], sizes = [8, 32], strides = [1, 1]} : vector<8x128xf32> to vector<8x32xf32>
    %288 = vector.extract_strided_slice %285 {offsets = [0, 32], sizes = [8, 32], strides = [1, 1]} : vector<8x128xf32> to vector<8x32xf32>
    %289 = vector.extract_strided_slice %286 {offsets = [0, 64], sizes = [8, 32], strides = [1, 1]} : vector<8x128xf32> to vector<8x32xf32>
    %290 = vector.extract_strided_slice %285 {offsets = [0, 96], sizes = [8, 32], strides = [1, 1]} : vector<8x128xf32> to vector<8x32xf32>
    %291 = arith.mulf %288, %271 : vector<8x32xf32>
    %292 = arith.mulf %287, %289 : vector<8x32xf32>
    %293 = arith.addf %291, %292 : vector<8x32xf32>
    %294 = math.tanh %293 : vector<8x32xf32>
    %295 = arith.mulf %290, %294 : vector<8x32xf32>
    %c8_i32_73 = arith.constant 8 : i32
    %296 = arith.muli %c4_i32_70, %c8_i32_73 : i32
    %297 = tpu.assume_multiple %296, 8 : i32
    %298 = arith.index_cast %297 : i32 to index
    %c0_74 = arith.constant 0 : index
    %299 = vector.load %arg12[%298, %c0_74] : memref<64x32xf32, #tpu.memory_space<vmem>>, vector<8x32xf32>
    tpu.vector_store %arg12[%298, %c0_74], %295 {strides = array<i32>} : memref<64x32xf32, #tpu.memory_space<vmem>>, vector<8x32xf32>,
    %c5_i32_75 = arith.constant 5 : i32
    %300 = arith.truncf %295 : vector<8x32xf32> to vector<8x32xbf16>
    %cst_76 = arith.constant dense<0.000000e+00> : vector<8x128xf32>
    %301 = tpu.matmul %300, %186, %cst_76 {dimension_numbers = #tpu.dot_dimension_numbers<[1], [0], [0], [1], [0, 0, 1, 1], [], []>} : vector<8x32xbf16>, vector<32x128xbf16>, vector<8x128xf32> -> vector<8x128xf32>
    %302 = arith.addf %301, %189 : vector<8x128xf32>
    %303 = arith.negf %302 : vector<8x128xf32>
    %304 = math.exp %303 : vector<8x128xf32>
    %cst_77 = arith.constant 1.000000e+00 : f32
    %305 = vector.broadcast %cst_77 : f32 to vector<8x128xf32>
    %306 = arith.addf %305, %304 : vector<8x128xf32>
    %307 = arith.divf %305, %306 : vector<8x128xf32>
    %308 = math.tanh %302 : vector<8x128xf32>
    %309 = vector.extract_strided_slice %307 {offsets = [0, 0], sizes = [8, 32], strides = [1, 1]} : vector<8x128xf32> to vector<8x32xf32>
    %310 = vector.extract_strided_slice %307 {offsets = [0, 32], sizes = [8, 32], strides = [1, 1]} : vector<8x128xf32> to vector<8x32xf32>
    %311 = vector.extract_strided_slice %308 {offsets = [0, 64], sizes = [8, 32], strides = [1, 1]} : vector<8x128xf32> to vector<8x32xf32>
    %312 = vector.extract_strided_slice %307 {offsets = [0, 96], sizes = [8, 32], strides = [1, 1]} : vector<8x128xf32> to vector<8x32xf32>
    %313 = arith.mulf %310, %293 : vector<8x32xf32>
    %314 = arith.mulf %309, %311 : vector<8x32xf32>
    %315 = arith.addf %313, %314 : vector<8x32xf32>
    %316 = math.tanh %315 : vector<8x32xf32>
    %317 = arith.mulf %312, %316 : vector<8x32xf32>
    %c8_i32_78 = arith.constant 8 : i32
    %318 = arith.muli %c5_i32_75, %c8_i32_78 : i32
    %319 = tpu.assume_multiple %318, 8 : i32
    %320 = arith.index_cast %319 : i32 to index
    %c0_79 = arith.constant 0 : index
    %321 = vector.load %arg12[%320, %c0_79] : memref<64x32xf32, #tpu.memory_space<vmem>>, vector<8x32xf32>
    tpu.vector_store %arg12[%320, %c0_79], %317 {strides = array<i32>} : memref<64x32xf32, #tpu.memory_space<vmem>>, vector<8x32xf32>,
    %c6_i32_80 = arith.constant 6 : i32
    %322 = arith.truncf %317 : vector<8x32xf32> to vector<8x32xbf16>
    %cst_81 = arith.constant dense<0.000000e+00> : vector<8x128xf32>
    %323 = tpu.matmul %322, %186, %cst_81 {dimension_numbers = #tpu.dot_dimension_numbers<[1], [0], [0], [1], [0, 0, 1, 1], [], []>} : vector<8x32xbf16>, vector<32x128xbf16>, vector<8x128xf32> -> vector<8x128xf32>
    %324 = arith.addf %323, %189 : vector<8x128xf32>
    %325 = arith.negf %324 : vector<8x128xf32>
    %326 = math.exp %325 : vector<8x128xf32>
    %cst_82 = arith.constant 1.000000e+00 : f32
    %327 = vector.broadcast %cst_82 : f32 to vector<8x128xf32>
    %328 = arith.addf %327, %326 : vector<8x128xf32>
    %329 = arith.divf %327, %328 : vector<8x128xf32>
    %330 = math.tanh %324 : vector<8x128xf32>
    %331 = vector.extract_strided_slice %329 {offsets = [0, 0], sizes = [8, 32], strides = [1, 1]} : vector<8x128xf32> to vector<8x32xf32>
    %332 = vector.extract_strided_slice %329 {offsets = [0, 32], sizes = [8, 32], strides = [1, 1]} : vector<8x128xf32> to vector<8x32xf32>
    %333 = vector.extract_strided_slice %330 {offsets = [0, 64], sizes = [8, 32], strides = [1, 1]} : vector<8x128xf32> to vector<8x32xf32>
    %334 = vector.extract_strided_slice %329 {offsets = [0, 96], sizes = [8, 32], strides = [1, 1]} : vector<8x128xf32> to vector<8x32xf32>
    %335 = arith.mulf %332, %315 : vector<8x32xf32>
    %336 = arith.mulf %331, %333 : vector<8x32xf32>
    %337 = arith.addf %335, %336 : vector<8x32xf32>
    %338 = math.tanh %337 : vector<8x32xf32>
    %339 = arith.mulf %334, %338 : vector<8x32xf32>
    %c8_i32_83 = arith.constant 8 : i32
    %340 = arith.muli %c6_i32_80, %c8_i32_83 : i32
    %341 = tpu.assume_multiple %340, 8 : i32
    %342 = arith.index_cast %341 : i32 to index
    %c0_84 = arith.constant 0 : index
    %343 = vector.load %arg12[%342, %c0_84] : memref<64x32xf32, #tpu.memory_space<vmem>>, vector<8x32xf32>
    tpu.vector_store %arg12[%342, %c0_84], %339 {strides = array<i32>} : memref<64x32xf32, #tpu.memory_space<vmem>>, vector<8x32xf32>,
    %c7_i32_85 = arith.constant 7 : i32
    %344 = arith.truncf %339 : vector<8x32xf32> to vector<8x32xbf16>
    %cst_86 = arith.constant dense<0.000000e+00> : vector<8x128xf32>
    %345 = tpu.matmul %344, %186, %cst_86 {dimension_numbers = #tpu.dot_dimension_numbers<[1], [0], [0], [1], [0, 0, 1, 1], [], []>} : vector<8x32xbf16>, vector<32x128xbf16>, vector<8x128xf32> -> vector<8x128xf32>
    %346 = arith.addf %345, %189 : vector<8x128xf32>
    %347 = arith.negf %346 : vector<8x128xf32>
    %348 = math.exp %347 : vector<8x128xf32>
    %cst_87 = arith.constant 1.000000e+00 : f32
    %349 = vector.broadcast %cst_87 : f32 to vector<8x128xf32>
    %350 = arith.addf %349, %348 : vector<8x128xf32>
    %351 = arith.divf %349, %350 : vector<8x128xf32>
    %352 = math.tanh %346 : vector<8x128xf32>
    %353 = vector.extract_strided_slice %351 {offsets = [0, 0], sizes = [8, 32], strides = [1, 1]} : vector<8x128xf32> to vector<8x32xf32>
    %354 = vector.extract_strided_slice %351 {offsets = [0, 32], sizes = [8, 32], strides = [1, 1]} : vector<8x128xf32> to vector<8x32xf32>
    %355 = vector.extract_strided_slice %352 {offsets = [0, 64], sizes = [8, 32], strides = [1, 1]} : vector<8x128xf32> to vector<8x32xf32>
    %356 = vector.extract_strided_slice %351 {offsets = [0, 96], sizes = [8, 32], strides = [1, 1]} : vector<8x128xf32> to vector<8x32xf32>
    %357 = arith.mulf %354, %337 : vector<8x32xf32>
    %358 = arith.mulf %353, %355 : vector<8x32xf32>
    %359 = arith.addf %357, %358 : vector<8x32xf32>
    %360 = math.tanh %359 : vector<8x32xf32>
    %361 = arith.mulf %356, %360 : vector<8x32xf32>
    %c8_i32_88 = arith.constant 8 : i32
    %362 = arith.muli %c7_i32_85, %c8_i32_88 : i32
    %363 = tpu.assume_multiple %362, 8 : i32
    %364 = arith.index_cast %363 : i32 to index
    %c0_89 = arith.constant 0 : index
    %365 = vector.load %arg12[%364, %c0_89] : memref<64x32xf32, #tpu.memory_space<vmem>>, vector<8x32xf32>
    tpu.vector_store %arg12[%364, %c0_89], %361 {strides = array<i32>} : memref<64x32xf32, #tpu.memory_space<vmem>>, vector<8x32xf32>,
    %c7_i32_90 = arith.constant 7 : i32
    %c0_91 = arith.constant 0 : index
    %c0_92 = arith.constant 0 : index
    %366 = vector.load %arg12[%c0_91, %c0_92] : memref<64x32xf32, #tpu.memory_space<vmem>>, vector<64x32xf32>
    %367 = arith.truncf %366 : vector<64x32xf32> to vector<64x32xbf16>
    %c0_93 = arith.constant 0 : index
    %c0_94 = arith.constant 0 : index
    %368 = vector.load %arg8[%c0_93, %c0_94] : memref<32x16xbf16, #tpu.memory_space<vmem>>, vector<32x16xbf16>
    %cst_95 = arith.constant dense<0.000000e+00> : vector<64x16xf32>
    %369 = tpu.matmul %367, %368, %cst_95 {dimension_numbers = #tpu.dot_dimension_numbers<[1], [0], [0], [1], [0, 0, 1, 1], [], []>} : vector<64x32xbf16>, vector<32x16xbf16>, vector<64x16xf32> -> vector<64x16xf32>
    %c0_96 = arith.constant 0 : index
    %c0_97 = arith.constant 0 : index
    %370 = vector.load %arg9[%c0_96, %c0_97] : memref<1x16xf32, #tpu.memory_space<vmem>>, vector<1x16xf32>
    %371 = vector.broadcast %370 : vector<1x16xf32> to vector<64x16xf32>
    %372 = arith.addf %369, %371 : vector<64x16xf32>
    %c0_98 = arith.constant 0 : index
    %c0_99 = arith.constant 0 : index
    %373 = vector.load %arg10[%c0_98, %c0_99] : memref<64x16xf32, #tpu.memory_space<vmem>>, vector<64x16xf32>
    tpu.vector_store %arg10[%c0_98, %c0_99], %372 {strides = array<i32>} : memref<64x16xf32, #tpu.memory_space<vmem>>, vector<64x16xf32>,
    return
  }
}

</mosaic_0001>

<llo_original>
// kernel: _lstm_gen_forward.1
$region0: #{_lstm_gen_forward.1}
  #allocation0 [shape = 'u32[]', space=smem, size = 0x4, offset = 0x4, fixed_abs, tag = 'smem constant byte address 0x4 - core index']
  #allocation1 [shape = 'u32[144,128]{1,0:T(1,128)}', space=vmem, size = 0x12000, scoped, tag = 'internal scratch']
  #allocation2 [shape = 'f32[64,128]{1,0:T(8,128)}', space=vmem, size = 0x8000, scoped, tag = 'scratch operand']
  #allocation3 [shape = 'f32[64,32]{1,0:T(8,128)}', space=vmem, size = 0x8000, scoped, tag = 'scratch operand']
  %s0 = inlined_call_operand.vmem [shape: bf16[64,16], index: 0, kind: input, shape index: {}]
  %s1 = inlined_call_operand.vmem [shape: bf16[16,128], index: 1, kind: input, shape index: {}]
  %s2 = inlined_call_operand.vmem [shape: bf16[32,128], index: 2, kind: input, shape index: {}]
  %s3 = inlined_call_operand.vmem [shape: f32[1,128], index: 3, kind: input, shape index: {}]
  %s4 = inlined_call_operand.vmem [shape: bf16[32,128], index: 4, kind: input, shape index: {}]
  %s5 = inlined_call_operand.vmem [shape: f32[1,128], index: 5, kind: input, shape index: {}]
  %s6 = inlined_call_operand.vmem [shape: bf16[32,128], index: 6, kind: input, shape index: {}]
  %s7 = inlined_call_operand.vmem [shape: f32[1,128], index: 7, kind: input, shape index: {}]
  %s8 = inlined_call_operand.vmem [shape: bf16[32,16], index: 8, kind: input, shape index: {}]
  %s9 = inlined_call_operand.vmem [shape: f32[1,16], index: 9, kind: input, shape index: {}]
  %s10 = inlined_call_operand.vmem [shape: f32[64,16], index: 10, kind: output, shape index: {}]
  %s11 = sld [smem:[#allocation0]]
  $region50: #{_lstm_gen_forward.1} parent=0
    _
  %s13 = ssub.s32 1, %s11
  %s14 = scalar_select 0, %s13, %s11
  // Predicated region
  $region2: #{_lstm_gen_forward.1} parent=0 // pred_check
    _
  $region3: #{_lstm_gen_forward.1} parent=0 // pred_check_branch
    %16 = sbr.rel (0) target = $region5
  $region4: #{_lstm_gen_forward.1} parent=0 // pred_region
    _
  $region5: #{_lstm_gen_forward.1} parent=0 // pred_fallthru
    _
  // Predicated region
  $region6: #{_lstm_gen_forward.1} parent=0 // pred_check
    _
  $region7: #{_lstm_gen_forward.1} parent=0 // pred_check_branch
    %18 = sbr.rel (0) target = $region9
  $region8: #{_lstm_gen_forward.1} parent=0 // pred_region
    _
  $region9: #{_lstm_gen_forward.1} parent=0 // pred_fallthru
    _
  // Predicated region
  $region10: #{_lstm_gen_forward.1} parent=0 // pred_check
    _
  $region11: #{_lstm_gen_forward.1} parent=0 // pred_check_branch
    %20 = sbr.rel (0) target = $region13
  $region12: #{_lstm_gen_forward.1} parent=0 // pred_region
    _
  $region13: #{_lstm_gen_forward.1} parent=0 // pred_fallthru
    _
  // Predicated region
  $region14: #{_lstm_gen_forward.1} parent=0 // pred_check
    _
  $region15: #{_lstm_gen_forward.1} parent=0 // pred_check_branch
    %22 = sbr.rel (0) target = $region17
  $region16: #{_lstm_gen_forward.1} parent=0 // pred_region
    _
  $region17: #{_lstm_gen_forward.1} parent=0 // pred_fallthru
    _
  // Predicated region
  $region18: #{_lstm_gen_forward.1} parent=0 // pred_check
    _
  $region19: #{_lstm_gen_forward.1} parent=0 // pred_check_branch
    %24 = sbr.rel (0) target = $region21
  $region20: #{_lstm_gen_forward.1} parent=0 // pred_region
    _
  $region21: #{_lstm_gen_forward.1} parent=0 // pred_fallthru
    _
  // Predicated region
  $region22: #{_lstm_gen_forward.1} parent=0 // pred_check
    _
  $region23: #{_lstm_gen_forward.1} parent=0 // pred_check_branch
    %26 = sbr.rel (0) target = $region25
  $region24: #{_lstm_gen_forward.1} parent=0 // pred_region
    _
  $region25: #{_lstm_gen_forward.1} parent=0 // pred_fallthru
    _
  // Predicated region
  $region26: #{_lstm_gen_forward.1} parent=0 // pred_check
    _
  $region27: #{_lstm_gen_forward.1} parent=0 // pred_check_branch
    %28 = sbr.rel (0) target = $region29
  $region28: #{_lstm_gen_forward.1} parent=0 // pred_region
    _
  $region29: #{_lstm_gen_forward.1} parent=0 // pred_fallthru
    _
  // Predicated region
  $region30: #{_lstm_gen_forward.1} parent=0 // pred_check
    _
  $region31: #{_lstm_gen_forward.1} parent=0 // pred_check_branch
    %30 = sbr.rel (0) target = $region33
  $region32: #{_lstm_gen_forward.1} parent=0 // pred_region
    _
  $region33: #{_lstm_gen_forward.1} parent=0 // pred_fallthru
    _
  // Predicated region
  $region34: #{_lstm_gen_forward.1} parent=0 // pred_check
    _
  $region35: #{_lstm_gen_forward.1} parent=0 // pred_check_branch
    %32 = sbr.rel (0) target = $region37
  $region36: #{_lstm_gen_forward.1} parent=0 // pred_region
    _
  $region37: #{_lstm_gen_forward.1} parent=0 // pred_fallthru
    _
  // Predicated region
  $region38: #{_lstm_gen_forward.1} parent=0 // pred_check
    _
  $region39: #{_lstm_gen_forward.1} parent=0 // pred_check_branch
    %34 = sbr.rel (0) target = $region41
  $region40: #{_lstm_gen_forward.1} parent=0 // pred_region
    _
  $region41: #{_lstm_gen_forward.1} parent=0 // pred_fallthru
    _
  %v36 = vld [vmem:[%s0] sm:$0xf]
  %v37 = vld [vmem:[%s0 + $0x4] sm:$0xf]
  %v38 = vld [vmem:[%s0 + $0x8] sm:$0xf]
  %v39 = vld [vmem:[%s0 + $0xc] sm:$0xf]
  %v40 = vld [vmem:[%s0 + $0x10] sm:$0xf]
  %v41 = vld [vmem:[%s0 + $0x14] sm:$0xf]
  %v42 = vld [vmem:[%s0 + $0x18] sm:$0xf]
  %v43 = vld [vmem:[%s0 + $0x1c] sm:$0xf]
  %v44 = vld [vmem:[%s1] sm:$0xf]
  %v45 = vld [vmem:[%s1 + $0x4] sm:$0xf]
  %v46 = vld [vmem:[%s3] sm:$0x1]
  %v48 = vlaneseq
  %v49 = vshrl.u32 %v48, 7
  %v50 = vsub.s32 0, %v49
  %v51 = vrot.slane %v46, %v50
  %v61 = vunpack.c.l.b16 %v36
  %v62 = vunpack.c.l.b16 %v37
  %v63 = vunpack.c.l.b16 %v38
  %v64 = vunpack.c.l.b16 %v39
  %v65 = vunpack.c.l.b16 %v40
  %v66 = vunpack.c.l.b16 %v41
  %v67 = vunpack.c.l.b16 %v42
  %v68 = vunpack.c.l.b16 %v43
  %v69 = vpack.c.b16 %v62, %v61
  %v70 = vpack.c.b16 %v64, %v63
  %v71 = vpack.c.b16 %v66, %v65
  %v72 = vpack.c.b16 %v68, %v67
  %v75 = vunpack.c.l.b16 %v44
  %v76 = vunpack.c.l.b16 %v45
  %v77 = vpack.c.b16 %v76, %v75
  %vm79 = vcmask 130048
  %v81 = vsel %vm79, %v69, 0
  %v84 = vsel %vm79, %v70, 0
  %v87 = vsel %vm79, %v71, 0
  %v90 = vsel %vm79, %v72, 0
  %92 = vmatprep.subr.bf16.mxu0 0
  %93 = vmatpush1.bf16.msra.mxu0 0
  %94 = vmatprep.subr.bf16.mxu0 0
  %95 = vmatpush1.bf16.msra.mxu0 0
  %96 = vmatprep.subr.bf16.mxu0 0
  %97 = vmatpush1.bf16.msra.mxu0 0
  %98 = vmatprep.subr.bf16.mxu0 0
  %99 = vmatpush1.bf16.msra.mxu0 0
  %100 = vmatprep.subr.bf16.mxu0 0
  %101 = vmatpush1.bf16.msra.mxu0 0
  %102 = vmatprep.subr.bf16.mxu0 0
  %103 = vmatpush1.bf16.msra.mxu0 0
  %104 = vmatprep.subr.bf16.mxu0 0
  %105 = vmatpush1.bf16.msra.mxu0 0
  %106 = vmatprep.subr.bf16.mxu0 0
  %107 = vmatpush1.bf16.msra.mxu0 %v77
  %108 = vmatprep.subr.bf16.mxu0 0
  %109 = vmatpush2.bf16.msra.mxu0 0
  %110 = vmatprep.subr.bf16.mxu0 0
  %111 = vmatpush2.bf16.msra.mxu0 0
  %112 = vmatprep.subr.bf16.mxu0 0
  %113 = vmatpush2.bf16.msra.mxu0 0
  %114 = vmatprep.subr.bf16.mxu0 0
  %115 = vmatpush2.bf16.msra.mxu0 0
  %116 = vmatprep.subr.bf16.mxu0 0
  %117 = vmatpush2.bf16.msra.mxu0 0
  %118 = vmatprep.subr.bf16.mxu0 0
  %119 = vmatpush2.bf16.msra.mxu0 0
  %120 = vmatprep.subr.bf16.mxu0 0
  %121 = vmatpush2.bf16.msra.mxu0 0
  %122 = vmatprep.subr.bf16.mxu0 0
  %123 = vmatpush2.bf16.msra.mxu0 0
  %124 = vmatprep.mubr.bf16.mxu0 0
  %125 = vmatmul.mubr.bf16.gmra.mxu0 %v81
  %v126 = vpop.f32.mrf.mxu0
  %v127 = vadd.f32 %v51, %v126
  %v128 = vpop.f32.mrf.mxu0
  %v129 = vpop.f32.mrf.mxu0
  %v130 = vadd.f32 %v51, %v129
  %v131 = vpop.f32.mrf.mxu0
  %132 = vmatprep.mubr.bf16.mxu0 0
  %133 = vmatmul.mubr.bf16.gmra.mxu0 %v84
  %v134 = vpop.f32.mrf.mxu0
  %v135 = vadd.f32 %v51, %v134
  %v136 = vpop.f32.mrf.mxu0
  %v137 = vpop.f32.mrf.mxu0
  %v138 = vadd.f32 %v51, %v137
  %v139 = vpop.f32.mrf.mxu0
  %140 = vmatprep.mubr.bf16.mxu0 0
  %141 = vmatmul.mubr.bf16.gmra.mxu0 %v87
  %v142 = vpop.f32.mrf.mxu0
  %v143 = vadd.f32 %v51, %v142
  %v144 = vpop.f32.mrf.mxu0
  %v145 = vpop.f32.mrf.mxu0
  %v146 = vadd.f32 %v51, %v145
  %v147 = vpop.f32.mrf.mxu0
  %148 = vmatprep.mubr.bf16.mxu0 0
  %149 = vmatmul.mubr.bf16.gmra.mxu0 %v90
  %v150 = vpop.f32.mrf.mxu0
  %v151 = vadd.f32 %v51, %v150
  %v152 = vpop.f32.mrf.mxu0
  %v153 = vpop.f32.mrf.mxu0
  %v154 = vadd.f32 %v51, %v153
  %v155 = vpop.f32.mrf.mxu0
  %156 = vdwg.mxu0
  %157 = vst [vmem:[#allocation2] sm:$0xff] %v127
  %158 = vst [vmem:[#allocation2 + $0x8] sm:$0xff] %v130
  %159 = vst [vmem:[#allocation2 + $0x10] sm:$0xff] %v135
  %160 = vst [vmem:[#allocation2 + $0x18] sm:$0xff] %v138
  %161 = vst [vmem:[#allocation2 + $0x20] sm:$0xff] %v143
  %162 = vst [vmem:[#allocation2 + $0x28] sm:$0xff] %v146
  %163 = vst [vmem:[#allocation2 + $0x30] sm:$0xff] %v151
  %164 = vst [vmem:[#allocation2 + $0x38] sm:$0xff] %v154
  %v165 = vld [vmem:[%s2] sm:$0xf]
  %v166 = vld [vmem:[%s2 + $0x4] sm:$0xf]
  %v167 = vld [vmem:[%s2 + $0x8] sm:$0xf]
  %v168 = vld [vmem:[%s2 + $0xc] sm:$0xf]
  %v169 = vld [vmem:[#allocation2] sm:$0xff]
  %v174 = vunpack.c.l.b16 %v165
  %v175 = vunpack.c.l.b16 %v166
  %v176 = vunpack.c.l.b16 %v167
  %v177 = vunpack.c.l.b16 %v168
  %v178 = vpack.c.b16 %v175, %v174
  %v179 = vpack.c.b16 %v177, %v176
  %vm182 = vcmask 261120
  %v184 = vsel %vm182, 0, 0
  %186 = vmatprep.subr.bf16.mxu0 0
  %187 = vmatpush1.bf16.msra.mxu0 0
  %188 = vmatprep.subr.bf16.mxu0 0
  %189 = vmatpush1.bf16.msra.mxu0 0
  %190 = vmatprep.subr.bf16.mxu0 0
  %191 = vmatpush1.bf16.msra.mxu0 0
  %192 = vmatprep.subr.bf16.mxu0 0
  %193 = vmatpush1.bf16.msra.mxu0 0
  %194 = vmatprep.subr.bf16.mxu0 0
  %195 = vmatpush1.bf16.msra.mxu0 0
  %196 = vmatprep.subr.bf16.mxu0 0
  %197 = vmatpush1.bf16.msra.mxu0 0
  %198 = vmatprep.subr.bf16.mxu0 0
  %199 = vmatpush1.bf16.msra.mxu0 %v179
  %200 = vmatprep.subr.bf16.mxu0 0
  %201 = vmatpush1.bf16.msra.mxu0 %v178
  %202 = vmatprep.subr.bf16.mxu0 0
  %203 = vmatpush2.bf16.msra.mxu0 0
  %204 = vmatprep.subr.bf16.mxu0 0
  %205 = vmatpush2.bf16.msra.mxu0 0
  %206 = vmatprep.subr.bf16.mxu0 0
  %207 = vmatpush2.bf16.msra.mxu0 0
  %208 = vmatprep.subr.bf16.mxu0 0
  %209 = vmatpush2.bf16.msra.mxu0 0
  %210 = vmatprep.subr.bf16.mxu0 0
  %211 = vmatpush2.bf16.msra.mxu0 0
  %212 = vmatprep.subr.bf16.mxu0 0
  %213 = vmatpush2.bf16.msra.mxu0 0
  %214 = vmatprep.subr.bf16.mxu0 0
  %215 = vmatpush2.bf16.msra.mxu0 0
  %216 = vmatprep.subr.bf16.mxu0 0
  %217 = vmatpush2.bf16.msra.mxu0 0
  %218 = vmatprep.mubr.bf16.mxu0 0
  %219 = vmatmul.mubr.bf16.gmra.mxu0 %v184
  %v220 = vpop.f32.mrf.mxu0
  %v221 = vadd.f32 0.0, %v220
  %v222 = vpop.f32.mrf.mxu0
  %v223 = vpop.f32.mrf.mxu0
  %v224 = vpop.f32.mrf.mxu0
  %225 = vdwg.mxu0
  %v226 = vadd.f32 %v169, %v221
  %v227 = vxor.u32 %v226, 2147483648
  %v228 = vmul.f32 %v227, 1.442695
  %v229 = vpow.pop %v228
  %v230 = vadd.f32 %v229, 1.0
  %v231 = vrcp.pop %v230
  %v232 = vmul.f32 1.0, %v231
  %v233 = vtanh.pop %v226
  %v234 = vmul.f32 %v232, 0.0
  %236 = vrot.lane.b32.xlu0 %v233, 64
  %v237 = vpop.permute.xlu0 %236
  %v239 = vmul.f32 %v232, %v237
  %241 = vrot.lane.b32.xlu0 %v239, 32
  %v242 = vpop.permute.xlu0 %241
  %v244 = vadd.f32 %v234, %v242
  %v245 = vtanh.pop %v244
  %247 = vrot.lane.b32.xlu0 %v245, 64
  %v248 = vpop.permute.xlu0 %247
  %v250 = vmul.f32 %v232, %v248
  %s251 = scalar_lea.vmem [#allocation2], 8
  %v252 = vld [vmem:[%s251] sm:$0xff]
  %v253 = vpack.c.bf16 %v250, %v250
  %255 = vrot.lane.b32.xlu0 %v253, 32
  %v256 = vpop.permute.xlu0 %255
  %v258 = vsel %vm182, %v256, 0
  %260 = vmatprep.subr.bf16.mxu0 0
  %261 = vmatpush1.bf16.msra.mxu0 0
  %262 = vmatprep.subr.bf16.mxu0 0
  %263 = vmatpush1.bf16.msra.mxu0 0
  %264 = vmatprep.subr.bf16.mxu0 0
  %265 = vmatpush1.bf16.msra.mxu0 0
  %266 = vmatprep.subr.bf16.mxu0 0
  %267 = vmatpush1.bf16.msra.mxu0 0
  %268 = vmatprep.subr.bf16.mxu0 0
  %269 = vmatpush1.bf16.msra.mxu0 0
  %270 = vmatprep.subr.bf16.mxu0 0
  %271 = vmatpush1.bf16.msra.mxu0 0
  %272 = vmatprep.subr.bf16.mxu0 0
  %273 = vmatpush1.bf16.msra.mxu0 %v179
  %274 = vmatprep.subr.bf16.mxu0 0
  %275 = vmatpush1.bf16.msra.mxu0 %v178
  %276 = vmatprep.subr.bf16.mxu0 0
  %277 = vmatpush2.bf16.msra.mxu0 0
  %278 = vmatprep.subr.bf16.mxu0 0
  %279 = vmatpush2.bf16.msra.mxu0 0
  %280 = vmatprep.subr.bf16.mxu0 0
  %281 = vmatpush2.bf16.msra.mxu0 0
  %282 = vmatprep.subr.bf16.mxu0 0
  %283 = vmatpush2.bf16.msra.mxu0 0
  %284 = vmatprep.subr.bf16.mxu0 0
  %285 = vmatpush2.bf16.msra.mxu0 0
  %286 = vmatprep.subr.bf16.mxu0 0
  %287 = vmatpush2.bf16.msra.mxu0 0
  %288 = vmatprep.subr.bf16.mxu0 0
  %289 = vmatpush2.bf16.msra.mxu0 0
  %290 = vmatprep.subr.bf16.mxu0 0
  %291 = vmatpush2.bf16.msra.mxu0 0
  %292 = vmatprep.mubr.bf16.mxu0 0
  %293 = vmatmul.mubr.bf16.gmra.mxu0 %v258
  %v294 = vpop.f32.mrf.mxu0
  %v295 = vadd.f32 0.0, %v294
  %v296 = vpop.f32.mrf.mxu0
  %v297 = vpop.f32.mrf.mxu0
  %v298 = vpop.f32.mrf.mxu0
  %299 = vdwg.mxu0
  %v300 = vadd.f32 %v252, %v295
  %v301 = vxor.u32 %v300, 2147483648
  %v302 = vmul.f32 %v301, 1.442695
  %v303 = vpow.pop %v302
  %v304 = vadd.f32 %v303, 1.0
  %v305 = vrcp.pop %v304
  %v306 = vmul.f32 1.0, %v305
  %v307 = vtanh.pop %v300
  %v308 = vmul.f32 %v306, %v244
  %310 = vrot.lane.b32.xlu0 %v307, 64
  %v311 = vpop.permute.xlu0 %310
  %v313 = vmul.f32 %v306, %v311
  %315 = vrot.lane.b32.xlu0 %v313, 32
  %v316 = vpop.permute.xlu0 %315
  %v318 = vadd.f32 %v308, %v316
  %v319 = vtanh.pop %v318
  %321 = vrot.lane.b32.xlu0 %v319, 64
  %v322 = vpop.permute.xlu0 %321
  %v324 = vmul.f32 %v306, %v322
  %s325 = scalar_lea.vmem [#allocation2], 16
  %v326 = vld [vmem:[%s325] sm:$0xff]
  %v327 = vpack.c.bf16 %v324, %v324
  %329 = vrot.lane.b32.xlu0 %v327, 32
  %v330 = vpop.permute.xlu0 %329
  %v332 = vsel %vm182, %v330, 0
  %334 = vmatprep.subr.bf16.mxu0 0
  %335 = vmatpush1.bf16.msra.mxu0 0
  %336 = vmatprep.subr.bf16.mxu0 0
  %337 = vmatpush1.bf16.msra.mxu0 0
  %338 = vmatprep.subr.bf16.mxu0 0
  %339 = vmatpush1.bf16.msra.mxu0 0
  %340 = vmatprep.subr.bf16.mxu0 0
  %341 = vmatpush1.bf16.msra.mxu0 0
  %342 = vmatprep.subr.bf16.mxu0 0
  %343 = vmatpush1.bf16.msra.mxu0 0
  %344 = vmatprep.subr.bf16.mxu0 0
  %345 = vmatpush1.bf16.msra.mxu0 0
  %346 = vmatprep.subr.bf16.mxu0 0
  %347 = vmatpush1.bf16.msra.mxu0 %v179
  %348 = vmatprep.subr.bf16.mxu0 0
  %349 = vmatpush1.bf16.msra.mxu0 %v178
  %350 = vmatprep.subr.bf16.mxu0 0
  %351 = vmatpush2.bf16.msra.mxu0 0
  %352 = vmatprep.subr.bf16.mxu0 0
  %353 = vmatpush2.bf16.msra.mxu0 0
  %354 = vmatprep.subr.bf16.mxu0 0
  %355 = vmatpush2.bf16.msra.mxu0 0
  %356 = vmatprep.subr.bf16.mxu0 0
  %357 = vmatpush2.bf16.msra.mxu0 0
  %358 = vmatprep.subr.bf16.mxu0 0
  %359 = vmatpush2.bf16.msra.mxu0 0
  %360 = vmatprep.subr.bf16.mxu0 0
  %361 = vmatpush2.bf16.msra.mxu0 0
  %362 = vmatprep.subr.bf16.mxu0 0
  %363 = vmatpush2.bf16.msra.mxu0 0
  %364 = vmatprep.subr.bf16.mxu0 0
  %365 = vmatpush2.bf16.msra.mxu0 0
  %366 = vmatprep.mubr.bf16.mxu0 0
  %367 = vmatmul.mubr.bf16.gmra.mxu0 %v332
  %v368 = vpop.f32.mrf.mxu0
  %v369 = vadd.f32 0.0, %v368
  %v370 = vpop.f32.mrf.mxu0
  %v371 = vpop.f32.mrf.mxu0
  %v372 = vpop.f32.mrf.mxu0
  %373 = vdwg.mxu0
  %v374 = vadd.f32 %v326, %v369
  %v375 = vxor.u32 %v374, 2147483648
  %v376 = vmul.f32 %v375, 1.442695
  %v377 = vpow.pop %v376
  %v378 = vadd.f32 %v377, 1.0
  %v379 = vrcp.pop %v378
  %v380 = vmul.f32 1.0, %v379
  %v381 = vtanh.pop %v374
  %v382 = vmul.f32 %v380, %v318
  %384 = vrot.lane.b32.xlu0 %v381, 64
  %v385 = vpop.permute.xlu0 %384
  %v387 = vmul.f32 %v380, %v385
  %389 = vrot.lane.b32.xlu0 %v387, 32
  %v390 = vpop.permute.xlu0 %389
  %v392 = vadd.f32 %v382, %v390
  %v393 = vtanh.pop %v392
  %395 = vrot.lane.b32.xlu0 %v393, 64
  %v396 = vpop.permute.xlu0 %395
  %v398 = vmul.f32 %v380, %v396
  %s399 = scalar_lea.vmem [#allocation2], 24
  %v400 = vld [vmem:[%s399] sm:$0xff]
  %v401 = vpack.c.bf16 %v398, %v398
  %403 = vrot.lane.b32.xlu0 %v401, 32
  %v404 = vpop.permute.xlu0 %403
  %v406 = vsel %vm182, %v404, 0
  %408 = vmatprep.subr.bf16.mxu0 0
  %409 = vmatpush1.bf16.msra.mxu0 0
  %410 = vmatprep.subr.bf16.mxu0 0
  %411 = vmatpush1.bf16.msra.mxu0 0
  %412 = vmatprep.subr.bf16.mxu0 0
  %413 = vmatpush1.bf16.msra.mxu0 0
  %414 = vmatprep.subr.bf16.mxu0 0
  %415 = vmatpush1.bf16.msra.mxu0 0
  %416 = vmatprep.subr.bf16.mxu0 0
  %417 = vmatpush1.bf16.msra.mxu0 0
  %418 = vmatprep.subr.bf16.mxu0 0
  %419 = vmatpush1.bf16.msra.mxu0 0
  %420 = vmatprep.subr.bf16.mxu0 0
  %421 = vmatpush1.bf16.msra.mxu0 %v179
  %422 = vmatprep.subr.bf16.mxu0 0
  %423 = vmatpush1.bf16.msra.mxu0 %v178
  %424 = vmatprep.subr.bf16.mxu0 0
  %425 = vmatpush2.bf16.msra.mxu0 0
  %426 = vmatprep.subr.bf16.mxu0 0
  %427 = vmatpush2.bf16.msra.mxu0 0
  %428 = vmatprep.subr.bf16.mxu0 0
  %429 = vmatpush2.bf16.msra.mxu0 0
  %430 = vmatprep.subr.bf16.mxu0 0
  %431 = vmatpush2.bf16.msra.mxu0 0
  %432 = vmatprep.subr.bf16.mxu0 0
  %433 = vmatpush2.bf16.msra.mxu0 0
  %434 = vmatprep.subr.bf16.mxu0 0
  %435 = vmatpush2.bf16.msra.mxu0 0
  %436 = vmatprep.subr.bf16.mxu0 0
  %437 = vmatpush2.bf16.msra.mxu0 0
  %438 = vmatprep.subr.bf16.mxu0 0
  %439 = vmatpush2.bf16.msra.mxu0 0
  %440 = vmatprep.mubr.bf16.mxu0 0
  %441 = vmatmul.mubr.bf16.gmra.mxu0 %v406
  %v442 = vpop.f32.mrf.mxu0
  %v443 = vadd.f32 0.0, %v442
  %v444 = vpop.f32.mrf.mxu0
  %v445 = vpop.f32.mrf.mxu0
  %v446 = vpop.f32.mrf.mxu0
  %447 = vdwg.mxu0
  %v448 = vadd.f32 %v400, %v443
  %v449 = vxor.u32 %v448, 2147483648
  %v450 = vmul.f32 %v449, 1.442695
  %v451 = vpow.pop %v450
  %v452 = vadd.f32 %v451, 1.0
  %v453 = vrcp.pop %v452
  %v454 = vmul.f32 1.0, %v453
  %v455 = vtanh.pop %v448
  %v456 = vmul.f32 %v454, %v392
  %458 = vrot.lane.b32.xlu0 %v455, 64
  %v459 = vpop.permute.xlu0 %458
  %v461 = vmul.f32 %v454, %v459
  %463 = vrot.lane.b32.xlu0 %v461, 32
  %v464 = vpop.permute.xlu0 %463
  %v466 = vadd.f32 %v456, %v464
  %v467 = vtanh.pop %v466
  %469 = vrot.lane.b32.xlu0 %v467, 64
  %v470 = vpop.permute.xlu0 %469
  %v472 = vmul.f32 %v454, %v470
  %s473 = scalar_lea.vmem [#allocation2], 32
  %v474 = vld [vmem:[%s473] sm:$0xff]
  %v475 = vpack.c.bf16 %v472, %v472
  %477 = vrot.lane.b32.xlu0 %v475, 32
  %v478 = vpop.permute.xlu0 %477
  %v480 = vsel %vm182, %v478, 0
  %482 = vmatprep.subr.bf16.mxu0 0
  %483 = vmatpush1.bf16.msra.mxu0 0
  %484 = vmatprep.subr.bf16.mxu0 0
  %485 = vmatpush1.bf16.msra.mxu0 0
  %486 = vmatprep.subr.bf16.mxu0 0
  %487 = vmatpush1.bf16.msra.mxu0 0
  %488 = vmatprep.subr.bf16.mxu0 0
  %489 = vmatpush1.bf16.msra.mxu0 0
  %490 = vmatprep.subr.bf16.mxu0 0
  %491 = vmatpush1.bf16.msra.mxu0 0
  %492 = vmatprep.subr.bf16.mxu0 0
  %493 = vmatpush1.bf16.msra.mxu0 0
  %494 = vmatprep.subr.bf16.mxu0 0
  %495 = vmatpush1.bf16.msra.mxu0 %v179
  %496 = vmatprep.subr.bf16.mxu0 0
  %497 = vmatpush1.bf16.msra.mxu0 %v178
  %498 = vmatprep.subr.bf16.mxu0 0
  %499 = vmatpush2.bf16.msra.mxu0 0
  %500 = vmatprep.subr.bf16.mxu0 0
  %501 = vmatpush2.bf16.msra.mxu0 0
  %502 = vmatprep.subr.bf16.mxu0 0
  %503 = vmatpush2.bf16.msra.mxu0 0
  %504 = vmatprep.subr.bf16.mxu0 0
  %505 = vmatpush2.bf16.msra.mxu0 0
  %506 = vmatprep.subr.bf16.mxu0 0
  %507 = vmatpush2.bf16.msra.mxu0 0
  %508 = vmatprep.subr.bf16.mxu0 0
  %509 = vmatpush2.bf16.msra.mxu0 0
  %510 = vmatprep.subr.bf16.mxu0 0
  %511 = vmatpush2.bf16.msra.mxu0 0
  %512 = vmatprep.subr.bf16.mxu0 0
  %513 = vmatpush2.bf16.msra.mxu0 0
  %514 = vmatprep.mubr.bf16.mxu0 0
  %515 = vmatmul.mubr.bf16.gmra.mxu0 %v480
  %v516 = vpop.f32.mrf.mxu0
  %v517 = vadd.f32 0.0, %v516
  %v518 = vpop.f32.mrf.mxu0
  %v519 = vpop.f32.mrf.mxu0
  %v520 = vpop.f32.mrf.mxu0
  %521 = vdwg.mxu0
  %v522 = vadd.f32 %v474, %v517
  %v523 = vxor.u32 %v522, 2147483648
  %v524 = vmul.f32 %v523, 1.442695
  %v525 = vpow.pop %v524
  %v526 = vadd.f32 %v525, 1.0
  %v527 = vrcp.pop %v526
  %v528 = vmul.f32 1.0, %v527
  %v529 = vtanh.pop %v522
  %v530 = vmul.f32 %v528, %v466
  %532 = vrot.lane.b32.xlu0 %v529, 64
  %v533 = vpop.permute.xlu0 %532
  %v535 = vmul.f32 %v528, %v533
  %537 = vrot.lane.b32.xlu0 %v535, 32
  %v538 = vpop.permute.xlu0 %537
  %v540 = vadd.f32 %v530, %v538
  %v541 = vtanh.pop %v540
  %543 = vrot.lane.b32.xlu0 %v541, 64
  %v544 = vpop.permute.xlu0 %543
  %v546 = vmul.f32 %v528, %v544
  %s547 = scalar_lea.vmem [#allocation2], 40
  %v548 = vld [vmem:[%s547] sm:$0xff]
  %v549 = vpack.c.bf16 %v546, %v546
  %551 = vrot.lane.b32.xlu0 %v549, 32
  %v552 = vpop.permute.xlu0 %551
  %v554 = vsel %vm182, %v552, 0
  %556 = vmatprep.subr.bf16.mxu0 0
  %557 = vmatpush1.bf16.msra.mxu0 0
  %558 = vmatprep.subr.bf16.mxu0 0
  %559 = vmatpush1.bf16.msra.mxu0 0
  %560 = vmatprep.subr.bf16.mxu0 0
  %561 = vmatpush1.bf16.msra.mxu0 0
  %562 = vmatprep.subr.bf16.mxu0 0
  %563 = vmatpush1.bf16.msra.mxu0 0
  %564 = vmatprep.subr.bf16.mxu0 0
  %565 = vmatpush1.bf16.msra.mxu0 0
  %566 = vmatprep.subr.bf16.mxu0 0
  %567 = vmatpush1.bf16.msra.mxu0 0
  %568 = vmatprep.subr.bf16.mxu0 0
  %569 = vmatpush1.bf16.msra.mxu0 %v179
  %570 = vmatprep.subr.bf16.mxu0 0
  %571 = vmatpush1.bf16.msra.mxu0 %v178
  %572 = vmatprep.subr.bf16.mxu0 0
  %573 = vmatpush2.bf16.msra.mxu0 0
  %574 = vmatprep.subr.bf16.mxu0 0
  %575 = vmatpush2.bf16.msra.mxu0 0
  %576 = vmatprep.subr.bf16.mxu0 0
  %577 = vmatpush2.bf16.msra.mxu0 0
  %578 = vmatprep.subr.bf16.mxu0 0
  %579 = vmatpush2.bf16.msra.mxu0 0
  %580 = vmatprep.subr.bf16.mxu0 0
  %581 = vmatpush2.bf16.msra.mxu0 0
  %582 = vmatprep.subr.bf16.mxu0 0
  %583 = vmatpush2.bf16.msra.mxu0 0
  %584 = vmatprep.subr.bf16.mxu0 0
  %585 = vmatpush2.bf16.msra.mxu0 0
  %586 = vmatprep.subr.bf16.mxu0 0
  %587 = vmatpush2.bf16.msra.mxu0 0
  %588 = vmatprep.mubr.bf16.mxu0 0
  %589 = vmatmul.mubr.bf16.gmra.mxu0 %v554
  %v590 = vpop.f32.mrf.mxu0
  %v591 = vadd.f32 0.0, %v590
  %v592 = vpop.f32.mrf.mxu0
  %v593 = vpop.f32.mrf.mxu0
  %v594 = vpop.f32.mrf.mxu0
  %595 = vdwg.mxu0
  %v596 = vadd.f32 %v548, %v591
  %v597 = vxor.u32 %v596, 2147483648
  %v598 = vmul.f32 %v597, 1.442695
  %v599 = vpow.pop %v598
  %v600 = vadd.f32 %v599, 1.0
  %v601 = vrcp.pop %v600
  %v602 = vmul.f32 1.0, %v601
  %v603 = vtanh.pop %v596
  %v604 = vmul.f32 %v602, %v540
  %606 = vrot.lane.b32.xlu0 %v603, 64
  %v607 = vpop.permute.xlu0 %606
  %v609 = vmul.f32 %v602, %v607
  %611 = vrot.lane.b32.xlu0 %v609, 32
  %v612 = vpop.permute.xlu0 %611
  %v614 = vadd.f32 %v604, %v612
  %v615 = vtanh.pop %v614
  %617 = vrot.lane.b32.xlu0 %v615, 64
  %v618 = vpop.permute.xlu0 %617
  %v620 = vmul.f32 %v602, %v618
  %s621 = scalar_lea.vmem [#allocation2], 48
  %v622 = vld [vmem:[%s621] sm:$0xff]
  %v623 = vpack.c.bf16 %v620, %v620
  %625 = vrot.lane.b32.xlu0 %v623, 32
  %v626 = vpop.permute.xlu0 %625
  %v628 = vsel %vm182, %v626, 0
  %630 = vmatprep.subr.bf16.mxu0 0
  %631 = vmatpush1.bf16.msra.mxu0 0
  %632 = vmatprep.subr.bf16.mxu0 0
  %633 = vmatpush1.bf16.msra.mxu0 0
  %634 = vmatprep.subr.bf16.mxu0 0
  %635 = vmatpush1.bf16.msra.mxu0 0
  %636 = vmatprep.subr.bf16.mxu0 0
  %637 = vmatpush1.bf16.msra.mxu0 0
  %638 = vmatprep.subr.bf16.mxu0 0
  %639 = vmatpush1.bf16.msra.mxu0 0
  %640 = vmatprep.subr.bf16.mxu0 0
  %641 = vmatpush1.bf16.msra.mxu0 0
  %642 = vmatprep.subr.bf16.mxu0 0
  %643 = vmatpush1.bf16.msra.mxu0 %v179
  %644 = vmatprep.subr.bf16.mxu0 0
  %645 = vmatpush1.bf16.msra.mxu0 %v178
  %646 = vmatprep.subr.bf16.mxu0 0
  %647 = vmatpush2.bf16.msra.mxu0 0
  %648 = vmatprep.subr.bf16.mxu0 0
  %649 = vmatpush2.bf16.msra.mxu0 0
  %650 = vmatprep.subr.bf16.mxu0 0
  %651 = vmatpush2.bf16.msra.mxu0 0
  %652 = vmatprep.subr.bf16.mxu0 0
  %653 = vmatpush2.bf16.msra.mxu0 0
  %654 = vmatprep.subr.bf16.mxu0 0
  %655 = vmatpush2.bf16.msra.mxu0 0
  %656 = vmatprep.subr.bf16.mxu0 0
  %657 = vmatpush2.bf16.msra.mxu0 0
  %658 = vmatprep.subr.bf16.mxu0 0
  %659 = vmatpush2.bf16.msra.mxu0 0
  %660 = vmatprep.subr.bf16.mxu0 0
  %661 = vmatpush2.bf16.msra.mxu0 0
  %662 = vmatprep.mubr.bf16.mxu0 0
  %663 = vmatmul.mubr.bf16.gmra.mxu0 %v628
  %v664 = vpop.f32.mrf.mxu0
  %v665 = vadd.f32 0.0, %v664
  %v666 = vpop.f32.mrf.mxu0
  %v667 = vpop.f32.mrf.mxu0
  %v668 = vpop.f32.mrf.mxu0
  %669 = vdwg.mxu0
  %v670 = vadd.f32 %v622, %v665
  %v671 = vxor.u32 %v670, 2147483648
  %v672 = vmul.f32 %v671, 1.442695
  %v673 = vpow.pop %v672
  %v674 = vadd.f32 %v673, 1.0
  %v675 = vrcp.pop %v674
  %v676 = vmul.f32 1.0, %v675
  %v677 = vtanh.pop %v670
  %v678 = vmul.f32 %v676, %v614
  %680 = vrot.lane.b32.xlu0 %v677, 64
  %v681 = vpop.permute.xlu0 %680
  %v683 = vmul.f32 %v676, %v681
  %685 = vrot.lane.b32.xlu0 %v683, 32
  %v686 = vpop.permute.xlu0 %685
  %v688 = vadd.f32 %v678, %v686
  %v689 = vtanh.pop %v688
  %691 = vrot.lane.b32.xlu0 %v689, 64
  %v692 = vpop.permute.xlu0 %691
  %v694 = vmul.f32 %v676, %v692
  %s695 = scalar_lea.vmem [#allocation2], 56
  %v696 = vld [vmem:[%s695] sm:$0xff]
  %v697 = vpack.c.bf16 %v694, %v694
  %699 = vrot.lane.b32.xlu0 %v697, 32
  %v700 = vpop.permute.xlu0 %699
  %v702 = vsel %vm182, %v700, 0
  %704 = vmatprep.subr.bf16.mxu0 0
  %705 = vmatpush1.bf16.msra.mxu0 0
  %706 = vmatprep.subr.bf16.mxu0 0
  %707 = vmatpush1.bf16.msra.mxu0 0
  %708 = vmatprep.subr.bf16.mxu0 0
  %709 = vmatpush1.bf16.msra.mxu0 0
  %710 = vmatprep.subr.bf16.mxu0 0
  %711 = vmatpush1.bf16.msra.mxu0 0
  %712 = vmatprep.subr.bf16.mxu0 0
  %713 = vmatpush1.bf16.msra.mxu0 0
  %714 = vmatprep.subr.bf16.mxu0 0
  %715 = vmatpush1.bf16.msra.mxu0 0
  %716 = vmatprep.subr.bf16.mxu0 0
  %717 = vmatpush1.bf16.msra.mxu0 %v179
  %718 = vmatprep.subr.bf16.mxu0 0
  %719 = vmatpush1.bf16.msra.mxu0 %v178
  %720 = vmatprep.subr.bf16.mxu0 0
  %721 = vmatpush2.bf16.msra.mxu0 0
  %722 = vmatprep.subr.bf16.mxu0 0
  %723 = vmatpush2.bf16.msra.mxu0 0
  %724 = vmatprep.subr.bf16.mxu0 0
  %725 = vmatpush2.bf16.msra.mxu0 0
  %726 = vmatprep.subr.bf16.mxu0 0
  %727 = vmatpush2.bf16.msra.mxu0 0
  %728 = vmatprep.subr.bf16.mxu0 0
  %729 = vmatpush2.bf16.msra.mxu0 0
  %730 = vmatprep.subr.bf16.mxu0 0
  %731 = vmatpush2.bf16.msra.mxu0 0
  %732 = vmatprep.subr.bf16.mxu0 0
  %733 = vmatpush2.bf16.msra.mxu0 0
  %734 = vmatprep.subr.bf16.mxu0 0
  %735 = vmatpush2.bf16.msra.mxu0 0
  %736 = vmatprep.mubr.bf16.mxu0 0
  %737 = vmatmul.mubr.bf16.gmra.mxu0 %v702
  %v738 = vpop.f32.mrf.mxu0
  %v739 = vadd.f32 0.0, %v738
  %v740 = vpop.f32.mrf.mxu0
  %v741 = vpop.f32.mrf.mxu0
  %v742 = vpop.f32.mrf.mxu0
  %743 = vdwg.mxu0
  %v744 = vadd.f32 %v696, %v739
  %v745 = vxor.u32 %v744, 2147483648
  %v746 = vmul.f32 %v745, 1.442695
  %v747 = vpow.pop %v746
  %v748 = vadd.f32 %v747, 1.0
  %v749 = vrcp.pop %v748
  %v750 = vmul.f32 1.0, %v749
  %v751 = vtanh.pop %v744
  %v752 = vmul.f32 %v750, %v688
  %754 = vrot.lane.b32.xlu0 %v751, 64
  %v755 = vpop.permute.xlu0 %754
  %v757 = vmul.f32 %v750, %v755
  %759 = vrot.lane.b32.xlu0 %v757, 32
  %v760 = vpop.permute.xlu0 %759
  %v762 = vadd.f32 %v752, %v760
  %v763 = vtanh.pop %v762
  %765 = vrot.lane.b32.xlu0 %v763, 64
  %v766 = vpop.permute.xlu0 %765
  %v768 = vmul.f32 %v750, %v766
  %v769 = vld [vmem:[%s6] sm:$0xf]
  %v770 = vld [vmem:[%s6 + $0x4] sm:$0xf]
  %v771 = vld [vmem:[%s6 + $0x8] sm:$0xf]
  %v772 = vld [vmem:[%s6 + $0xc] sm:$0xf]
  %v773 = vld [vmem:[%s7] sm:$0x1]
  %v775 = vlaneseq
  %v776 = vshrl.u32 %v775, 7
  %v777 = vsub.s32 0, %v776
  %v778 = vrot.slane %v773, %v777
  %v780 = vpack.c.bf16 %v768, %v768
  %v781 = vld [vmem:[%s4] sm:$0xf]
  %v782 = vld [vmem:[%s4 + $0x4] sm:$0xf]
  %v783 = vld [vmem:[%s4 + $0x8] sm:$0xf]
  %v784 = vld [vmem:[%s4 + $0xc] sm:$0xf]
  %v785 = vld [vmem:[%s5] sm:$0x1]
  %v787 = vlaneseq
  %v788 = vshrl.u32 %v787, 7
  %v789 = vsub.s32 0, %v788
  %v790 = vrot.slane %v785, %v789
  %793 = vrot.lane.b32.xlu0 %v780, 32
  %v794 = vpop.permute.xlu0 %793
  %v799 = vunpack.c.l.b16 %v781
  %v800 = vunpack.c.l.b16 %v782
  %v801 = vunpack.c.l.b16 %v783
  %v802 = vunpack.c.l.b16 %v784
  %v803 = vpack.c.b16 %v800, %v799
  %v804 = vpack.c.b16 %v802, %v801
  %v808 = vsel %vm182, %v794, 0
  %810 = vmatprep.subr.bf16.mxu0 0
  %811 = vmatpush1.bf16.msra.mxu0 0
  %812 = vmatprep.subr.bf16.mxu0 0
  %813 = vmatpush1.bf16.msra.mxu0 0
  %814 = vmatprep.subr.bf16.mxu0 0
  %815 = vmatpush1.bf16.msra.mxu0 0
  %816 = vmatprep.subr.bf16.mxu0 0
  %817 = vmatpush1.bf16.msra.mxu0 0
  %818 = vmatprep.subr.bf16.mxu0 0
  %819 = vmatpush1.bf16.msra.mxu0 0
  %820 = vmatprep.subr.bf16.mxu0 0
  %821 = vmatpush1.bf16.msra.mxu0 0
  %822 = vmatprep.subr.bf16.mxu0 0
  %823 = vmatpush1.bf16.msra.mxu0 %v804
  %824 = vmatprep.subr.bf16.mxu0 0
  %825 = vmatpush1.bf16.msra.mxu0 %v803
  %826 = vmatprep.subr.bf16.mxu0 0
  %827 = vmatpush2.bf16.msra.mxu0 0
  %828 = vmatprep.subr.bf16.mxu0 0
  %829 = vmatpush2.bf16.msra.mxu0 0
  %830 = vmatprep.subr.bf16.mxu0 0
  %831 = vmatpush2.bf16.msra.mxu0 0
  %832 = vmatprep.subr.bf16.mxu0 0
  %833 = vmatpush2.bf16.msra.mxu0 0
  %834 = vmatprep.subr.bf16.mxu0 0
  %835 = vmatpush2.bf16.msra.mxu0 0
  %836 = vmatprep.subr.bf16.mxu0 0
  %837 = vmatpush2.bf16.msra.mxu0 0
  %838 = vmatprep.subr.bf16.mxu0 0
  %839 = vmatpush2.bf16.msra.mxu0 0
  %840 = vmatprep.subr.bf16.mxu0 0
  %841 = vmatpush2.bf16.msra.mxu0 0
  %842 = vmatprep.mubr.bf16.mxu0 0
  %843 = vmatmul.mubr.bf16.gmra.mxu0 %v808
  %v844 = vpop.f32.mrf.mxu0
  %v845 = vadd.f32 %v790, %v844
  %v846 = vpop.f32.mrf.mxu0
  %v847 = vpop.f32.mrf.mxu0
  %v848 = vpop.f32.mrf.mxu0
  %849 = vdwg.mxu0
  %v850 = vxor.u32 %v845, 2147483648
  %v851 = vmul.f32 %v850, 1.442695
  %v852 = vpow.pop %v851
  %v853 = vadd.f32 %v852, 1.0
  %v854 = vrcp.pop %v853
  %v855 = vmul.f32 1.0, %v854
  %v856 = vtanh.pop %v845
  %v857 = vmul.f32 %v855, %v762
  %859 = vrot.lane.b32.xlu0 %v856, 64
  %v860 = vpop.permute.xlu0 %859
  %v862 = vmul.f32 %v855, %v860
  %864 = vrot.lane.b32.xlu0 %v862, 32
  %v865 = vpop.permute.xlu0 %864
  %v867 = vadd.f32 %v857, %v865
  %v868 = vtanh.pop %v867
  %870 = vrot.lane.b32.xlu0 %v868, 64
  %v871 = vpop.permute.xlu0 %870
  %v873 = vmul.f32 %v855, %v871
  %875 = vrot.lane.b32.xlu0 %v873, 32
  %v876 = vpop.permute.xlu0 %875
  %878 = vst.msk [vmem:[#allocation3] sm:$0xff] %vm182, %v876
  %v879 = vpack.c.bf16 %v873, %v873
  %881 = vrot.lane.b32.xlu0 %v879, 32
  %v882 = vpop.permute.xlu0 %881
  %v887 = vunpack.c.l.b16 %v769
  %v888 = vunpack.c.l.b16 %v770
  %v889 = vunpack.c.l.b16 %v771
  %v890 = vunpack.c.l.b16 %v772
  %v891 = vpack.c.b16 %v888, %v887
  %v892 = vpack.c.b16 %v890, %v889
  %v896 = vsel %vm182, %v882, 0
  %898 = vmatprep.subr.bf16.mxu0 0
  %899 = vmatpush1.bf16.msra.mxu0 0
  %900 = vmatprep.subr.bf16.mxu0 0
  %901 = vmatpush1.bf16.msra.mxu0 0
  %902 = vmatprep.subr.bf16.mxu0 0
  %903 = vmatpush1.bf16.msra.mxu0 0
  %904 = vmatprep.subr.bf16.mxu0 0
  %905 = vmatpush1.bf16.msra.mxu0 0
  %906 = vmatprep.subr.bf16.mxu0 0
  %907 = vmatpush1.bf16.msra.mxu0 0
  %908 = vmatprep.subr.bf16.mxu0 0
  %909 = vmatpush1.bf16.msra.mxu0 0
  %910 = vmatprep.subr.bf16.mxu0 0
  %911 = vmatpush1.bf16.msra.mxu0 %v892
  %912 = vmatprep.subr.bf16.mxu0 0
  %913 = vmatpush1.bf16.msra.mxu0 %v891
  %914 = vmatprep.subr.bf16.mxu0 0
  %915 = vmatpush2.bf16.msra.mxu0 0
  %916 = vmatprep.subr.bf16.mxu0 0
  %917 = vmatpush2.bf16.msra.mxu0 0
  %918 = vmatprep.subr.bf16.mxu0 0
  %919 = vmatpush2.bf16.msra.mxu0 0
  %920 = vmatprep.subr.bf16.mxu0 0
  %921 = vmatpush2.bf16.msra.mxu0 0
  %922 = vmatprep.subr.bf16.mxu0 0
  %923 = vmatpush2.bf16.msra.mxu0 0
  %924 = vmatprep.subr.bf16.mxu0 0
  %925 = vmatpush2.bf16.msra.mxu0 0
  %926 = vmatprep.subr.bf16.mxu0 0
  %927 = vmatpush2.bf16.msra.mxu0 0
  %928 = vmatprep.subr.bf16.mxu0 0
  %929 = vmatpush2.bf16.msra.mxu0 0
  %930 = vmatprep.mubr.bf16.mxu0 0
  %931 = vmatmul.mubr.bf16.gmra.mxu0 %v896
  %v932 = vpop.f32.mrf.mxu0
  %v933 = vadd.f32 %v778, %v932
  %v934 = vpop.f32.mrf.mxu0
  %v935 = vpop.f32.mrf.mxu0
  %v936 = vpop.f32.mrf.mxu0
  %937 = vdwg.mxu0
  %v938 = vxor.u32 %v933, 2147483648
  %v939 = vmul.f32 %v938, 1.442695
  %v940 = vpow.pop %v939
  %v941 = vadd.f32 %v940, 1.0
  %v942 = vrcp.pop %v941
  %v943 = vmul.f32 1.0, %v942
  %v944 = vtanh.pop %v933
  %v945 = vmul.f32 %v943, %v867
  %947 = vrot.lane.b32.xlu0 %v944, 64
  %v948 = vpop.permute.xlu0 %947
  %v950 = vmul.f32 %v943, %v948
  %952 = vrot.lane.b32.xlu0 %v950, 32
  %v953 = vpop.permute.xlu0 %952
  %v955 = vadd.f32 %v945, %v953
  %v956 = vtanh.pop %v955
  %958 = vrot.lane.b32.xlu0 %v956, 64
  %v959 = vpop.permute.xlu0 %958
  %v961 = vmul.f32 %v943, %v959
  %963 = vrot.lane.b32.xlu0 %v961, 32
  %v964 = vpop.permute.xlu0 %963
  %s966 = scalar_lea.vmem [#allocation3], 8
  %967 = vst.msk [vmem:[%s966] sm:$0xff] %vm182, %v964
  %v968 = vpack.c.bf16 %v961, %v961
  %970 = vrot.lane.b32.xlu0 %v968, 32
  %v971 = vpop.permute.xlu0 %970
  %v973 = vsel %vm182, %v971, 0
  %975 = vmatprep.subr.bf16.mxu0 0
  %976 = vmatpush1.bf16.msra.mxu0 0
  %977 = vmatprep.subr.bf16.mxu0 0
  %978 = vmatpush1.bf16.msra.mxu0 0
  %979 = vmatprep.subr.bf16.mxu0 0
  %980 = vmatpush1.bf16.msra.mxu0 0
  %981 = vmatprep.subr.bf16.mxu0 0
  %982 = vmatpush1.bf16.msra.mxu0 0
  %983 = vmatprep.subr.bf16.mxu0 0
  %984 = vmatpush1.bf16.msra.mxu0 0
  %985 = vmatprep.subr.bf16.mxu0 0
  %986 = vmatpush1.bf16.msra.mxu0 0
  %987 = vmatprep.subr.bf16.mxu0 0
  %988 = vmatpush1.bf16.msra.mxu0 %v892
  %989 = vmatprep.subr.bf16.mxu0 0
  %990 = vmatpush1.bf16.msra.mxu0 %v891
  %991 = vmatprep.subr.bf16.mxu0 0
  %992 = vmatpush2.bf16.msra.mxu0 0
  %993 = vmatprep.subr.bf16.mxu0 0
  %994 = vmatpush2.bf16.msra.mxu0 0
  %995 = vmatprep.subr.bf16.mxu0 0
  %996 = vmatpush2.bf16.msra.mxu0 0
  %997 = vmatprep.subr.bf16.mxu0 0
  %998 = vmatpush2.bf16.msra.mxu0 0
  %999 = vmatprep.subr.bf16.mxu0 0
  %1000 = vmatpush2.bf16.msra.mxu0 0
  %1001 = vmatprep.subr.bf16.mxu0 0
  %1002 = vmatpush2.bf16.msra.mxu0 0
  %1003 = vmatprep.subr.bf16.mxu0 0
  %1004 = vmatpush2.bf16.msra.mxu0 0
  %1005 = vmatprep.subr.bf16.mxu0 0
  %1006 = vmatpush2.bf16.msra.mxu0 0
  %1007 = vmatprep.mubr.bf16.mxu0 0
  %1008 = vmatmul.mubr.bf16.gmra.mxu0 %v973
  %v1009 = vpop.f32.mrf.mxu0
  %v1010 = vadd.f32 %v778, %v1009
  %v1011 = vpop.f32.mrf.mxu0
  %v1012 = vpop.f32.mrf.mxu0
  %v1013 = vpop.f32.mrf.mxu0
  %1014 = vdwg.mxu0
  %v1015 = vxor.u32 %v1010, 2147483648
  %v1016 = vmul.f32 %v1015, 1.442695
  %v1017 = vpow.pop %v1016
  %v1018 = vadd.f32 %v1017, 1.0
  %v1019 = vrcp.pop %v1018
  %v1020 = vmul.f32 1.0, %v1019
  %v1021 = vtanh.pop %v1010
  %v1022 = vmul.f32 %v1020, %v955
  %1024 = vrot.lane.b32.xlu0 %v1021, 64
  %v1025 = vpop.permute.xlu0 %1024
  %v1027 = vmul.f32 %v1020, %v1025
  %1029 = vrot.lane.b32.xlu0 %v1027, 32
  %v1030 = vpop.permute.xlu0 %1029
  %v1032 = vadd.f32 %v1022, %v1030
  %v1033 = vtanh.pop %v1032
  %1035 = vrot.lane.b32.xlu0 %v1033, 64
  %v1036 = vpop.permute.xlu0 %1035
  %v1038 = vmul.f32 %v1020, %v1036
  %1040 = vrot.lane.b32.xlu0 %v1038, 32
  %v1041 = vpop.permute.xlu0 %1040
  %s1043 = scalar_lea.vmem [#allocation3], 16
  %1044 = vst.msk [vmem:[%s1043] sm:$0xff] %vm182, %v1041
  %v1045 = vpack.c.bf16 %v1038, %v1038
  %1047 = vrot.lane.b32.xlu0 %v1045, 32
  %v1048 = vpop.permute.xlu0 %1047
  %v1050 = vsel %vm182, %v1048, 0
  %1052 = vmatprep.subr.bf16.mxu0 0
  %1053 = vmatpush1.bf16.msra.mxu0 0
  %1054 = vmatprep.subr.bf16.mxu0 0
  %1055 = vmatpush1.bf16.msra.mxu0 0
  %1056 = vmatprep.subr.bf16.mxu0 0
  %1057 = vmatpush1.bf16.msra.mxu0 0
  %1058 = vmatprep.subr.bf16.mxu0 0
  %1059 = vmatpush1.bf16.msra.mxu0 0
  %1060 = vmatprep.subr.bf16.mxu0 0
  %1061 = vmatpush1.bf16.msra.mxu0 0
  %1062 = vmatprep.subr.bf16.mxu0 0
  %1063 = vmatpush1.bf16.msra.mxu0 0
  %1064 = vmatprep.subr.bf16.mxu0 0
  %1065 = vmatpush1.bf16.msra.mxu0 %v892
  %1066 = vmatprep.subr.bf16.mxu0 0
  %1067 = vmatpush1.bf16.msra.mxu0 %v891
  %1068 = vmatprep.subr.bf16.mxu0 0
  %1069 = vmatpush2.bf16.msra.mxu0 0
  %1070 = vmatprep.subr.bf16.mxu0 0
  %1071 = vmatpush2.bf16.msra.mxu0 0
  %1072 = vmatprep.subr.bf16.mxu0 0
  %1073 = vmatpush2.bf16.msra.mxu0 0
  %1074 = vmatprep.subr.bf16.mxu0 0
  %1075 = vmatpush2.bf16.msra.mxu0 0
  %1076 = vmatprep.subr.bf16.mxu0 0
  %1077 = vmatpush2.bf16.msra.mxu0 0
  %1078 = vmatprep.subr.bf16.mxu0 0
  %1079 = vmatpush2.bf16.msra.mxu0 0
  %1080 = vmatprep.subr.bf16.mxu0 0
  %1081 = vmatpush2.bf16.msra.mxu0 0
  %1082 = vmatprep.subr.bf16.mxu0 0
  %1083 = vmatpush2.bf16.msra.mxu0 0
  %1084 = vmatprep.mubr.bf16.mxu0 0
  %1085 = vmatmul.mubr.bf16.gmra.mxu0 %v1050
  %v1086 = vpop.f32.mrf.mxu0
  %v1087 = vadd.f32 %v778, %v1086
  %v1088 = vpop.f32.mrf.mxu0
  %v1089 = vpop.f32.mrf.mxu0
  %v1090 = vpop.f32.mrf.mxu0
  %1091 = vdwg.mxu0
  %v1092 = vxor.u32 %v1087, 2147483648
  %v1093 = vmul.f32 %v1092, 1.442695
  %v1094 = vpow.pop %v1093
  %v1095 = vadd.f32 %v1094, 1.0
  %v1096 = vrcp.pop %v1095
  %v1097 = vmul.f32 1.0, %v1096
  %v1098 = vtanh.pop %v1087
  %v1099 = vmul.f32 %v1097, %v1032
  %1101 = vrot.lane.b32.xlu0 %v1098, 64
  %v1102 = vpop.permute.xlu0 %1101
  %v1104 = vmul.f32 %v1097, %v1102
  %1106 = vrot.lane.b32.xlu0 %v1104, 32
  %v1107 = vpop.permute.xlu0 %1106
  %v1109 = vadd.f32 %v1099, %v1107
  %v1110 = vtanh.pop %v1109
  %1112 = vrot.lane.b32.xlu0 %v1110, 64
  %v1113 = vpop.permute.xlu0 %1112
  %v1115 = vmul.f32 %v1097, %v1113
  %1117 = vrot.lane.b32.xlu0 %v1115, 32
  %v1118 = vpop.permute.xlu0 %1117
  %s1120 = scalar_lea.vmem [#allocation3], 24
  %1121 = vst.msk [vmem:[%s1120] sm:$0xff] %vm182, %v1118
  %v1122 = vpack.c.bf16 %v1115, %v1115
  %1124 = vrot.lane.b32.xlu0 %v1122, 32
  %v1125 = vpop.permute.xlu0 %1124
  %v1127 = vsel %vm182, %v1125, 0
  %1129 = vmatprep.subr.bf16.mxu0 0
  %1130 = vmatpush1.bf16.msra.mxu0 0
  %1131 = vmatprep.subr.bf16.mxu0 0
  %1132 = vmatpush1.bf16.msra.mxu0 0
  %1133 = vmatprep.subr.bf16.mxu0 0
  %1134 = vmatpush1.bf16.msra.mxu0 0
  %1135 = vmatprep.subr.bf16.mxu0 0
  %1136 = vmatpush1.bf16.msra.mxu0 0
  %1137 = vmatprep.subr.bf16.mxu0 0
  %1138 = vmatpush1.bf16.msra.mxu0 0
  %1139 = vmatprep.subr.bf16.mxu0 0
  %1140 = vmatpush1.bf16.msra.mxu0 0
  %1141 = vmatprep.subr.bf16.mxu0 0
  %1142 = vmatpush1.bf16.msra.mxu0 %v892
  %1143 = vmatprep.subr.bf16.mxu0 0
  %1144 = vmatpush1.bf16.msra.mxu0 %v891
  %1145 = vmatprep.subr.bf16.mxu0 0
  %1146 = vmatpush2.bf16.msra.mxu0 0
  %1147 = vmatprep.subr.bf16.mxu0 0
  %1148 = vmatpush2.bf16.msra.mxu0 0
  %1149 = vmatprep.subr.bf16.mxu0 0
  %1150 = vmatpush2.bf16.msra.mxu0 0
  %1151 = vmatprep.subr.bf16.mxu0 0
  %1152 = vmatpush2.bf16.msra.mxu0 0
  %1153 = vmatprep.subr.bf16.mxu0 0
  %1154 = vmatpush2.bf16.msra.mxu0 0
  %1155 = vmatprep.subr.bf16.mxu0 0
  %1156 = vmatpush2.bf16.msra.mxu0 0
  %1157 = vmatprep.subr.bf16.mxu0 0
  %1158 = vmatpush2.bf16.msra.mxu0 0
  %1159 = vmatprep.subr.bf16.mxu0 0
  %1160 = vmatpush2.bf16.msra.mxu0 0
  %1161 = vmatprep.mubr.bf16.mxu0 0
  %1162 = vmatmul.mubr.bf16.gmra.mxu0 %v1127
  %v1163 = vpop.f32.mrf.mxu0
  %v1164 = vadd.f32 %v778, %v1163
  %v1165 = vpop.f32.mrf.mxu0
  %v1166 = vpop.f32.mrf.mxu0
  %v1167 = vpop.f32.mrf.mxu0
  %1168 = vdwg.mxu0
  %v1169 = vxor.u32 %v1164, 2147483648
  %v1170 = vmul.f32 %v1169, 1.442695
  %v1171 = vpow.pop %v1170
  %v1172 = vadd.f32 %v1171, 1.0
  %v1173 = vrcp.pop %v1172
  %v1174 = vmul.f32 1.0, %v1173
  %v1175 = vtanh.pop %v1164
  %v1176 = vmul.f32 %v1174, %v1109
  %1178 = vrot.lane.b32.xlu0 %v1175, 64
  %v1179 = vpop.permute.xlu0 %1178
  %v1181 = vmul.f32 %v1174, %v1179
  %1183 = vrot.lane.b32.xlu0 %v1181, 32
  %v1184 = vpop.permute.xlu0 %1183
  %v1186 = vadd.f32 %v1176, %v1184
  %v1187 = vtanh.pop %v1186
  %1189 = vrot.lane.b32.xlu0 %v1187, 64
  %v1190 = vpop.permute.xlu0 %1189
  %v1192 = vmul.f32 %v1174, %v1190
  %1194 = vrot.lane.b32.xlu0 %v1192, 32
  %v1195 = vpop.permute.xlu0 %1194
  %s1197 = scalar_lea.vmem [#allocation3], 32
  %1198 = vst.msk [vmem:[%s1197] sm:$0xff] %vm182, %v1195
  %v1199 = vpack.c.bf16 %v1192, %v1192
  %1201 = vrot.lane.b32.xlu0 %v1199, 32
  %v1202 = vpop.permute.xlu0 %1201
  %v1204 = vsel %vm182, %v1202, 0
  %1206 = vmatprep.subr.bf16.mxu0 0
  %1207 = vmatpush1.bf16.msra.mxu0 0
  %1208 = vmatprep.subr.bf16.mxu0 0
  %1209 = vmatpush1.bf16.msra.mxu0 0
  %1210 = vmatprep.subr.bf16.mxu0 0
  %1211 = vmatpush1.bf16.msra.mxu0 0
  %1212 = vmatprep.subr.bf16.mxu0 0
  %1213 = vmatpush1.bf16.msra.mxu0 0
  %1214 = vmatprep.subr.bf16.mxu0 0
  %1215 = vmatpush1.bf16.msra.mxu0 0
  %1216 = vmatprep.subr.bf16.mxu0 0
  %1217 = vmatpush1.bf16.msra.mxu0 0
  %1218 = vmatprep.subr.bf16.mxu0 0
  %1219 = vmatpush1.bf16.msra.mxu0 %v892
  %1220 = vmatprep.subr.bf16.mxu0 0
  %1221 = vmatpush1.bf16.msra.mxu0 %v891
  %1222 = vmatprep.subr.bf16.mxu0 0
  %1223 = vmatpush2.bf16.msra.mxu0 0
  %1224 = vmatprep.subr.bf16.mxu0 0
  %1225 = vmatpush2.bf16.msra.mxu0 0
  %1226 = vmatprep.subr.bf16.mxu0 0
  %1227 = vmatpush2.bf16.msra.mxu0 0
  %1228 = vmatprep.subr.bf16.mxu0 0
  %1229 = vmatpush2.bf16.msra.mxu0 0
  %1230 = vmatprep.subr.bf16.mxu0 0
  %1231 = vmatpush2.bf16.msra.mxu0 0
  %1232 = vmatprep.subr.bf16.mxu0 0
  %1233 = vmatpush2.bf16.msra.mxu0 0
  %1234 = vmatprep.subr.bf16.mxu0 0
  %1235 = vmatpush2.bf16.msra.mxu0 0
  %1236 = vmatprep.subr.bf16.mxu0 0
  %1237 = vmatpush2.bf16.msra.mxu0 0
  %1238 = vmatprep.mubr.bf16.mxu0 0
  %1239 = vmatmul.mubr.bf16.gmra.mxu0 %v1204
  %v1240 = vpop.f32.mrf.mxu0
  %v1241 = vadd.f32 %v778, %v1240
  %v1242 = vpop.f32.mrf.mxu0
  %v1243 = vpop.f32.mrf.mxu0
  %v1244 = vpop.f32.mrf.mxu0
  %1245 = vdwg.mxu0
  %v1246 = vxor.u32 %v1241, 2147483648
  %v1247 = vmul.f32 %v1246, 1.442695
  %v1248 = vpow.pop %v1247
  %v1249 = vadd.f32 %v1248, 1.0
  %v1250 = vrcp.pop %v1249
  %v1251 = vmul.f32 1.0, %v1250
  %v1252 = vtanh.pop %v1241
  %v1253 = vmul.f32 %v1251, %v1186
  %1255 = vrot.lane.b32.xlu0 %v1252, 64
  %v1256 = vpop.permute.xlu0 %1255
  %v1258 = vmul.f32 %v1251, %v1256
  %1260 = vrot.lane.b32.xlu0 %v1258, 32
  %v1261 = vpop.permute.xlu0 %1260
  %v1263 = vadd.f32 %v1253, %v1261
  %v1264 = vtanh.pop %v1263
  %1266 = vrot.lane.b32.xlu0 %v1264, 64
  %v1267 = vpop.permute.xlu0 %1266
  %v1269 = vmul.f32 %v1251, %v1267
  %1271 = vrot.lane.b32.xlu0 %v1269, 32
  %v1272 = vpop.permute.xlu0 %1271
  %s1274 = scalar_lea.vmem [#allocation3], 40
  %1275 = vst.msk [vmem:[%s1274] sm:$0xff] %vm182, %v1272
  %v1276 = vpack.c.bf16 %v1269, %v1269
  %1278 = vrot.lane.b32.xlu0 %v1276, 32
  %v1279 = vpop.permute.xlu0 %1278
  %v1281 = vsel %vm182, %v1279, 0
  %1283 = vmatprep.subr.bf16.mxu0 0
  %1284 = vmatpush1.bf16.msra.mxu0 0
  %1285 = vmatprep.subr.bf16.mxu0 0
  %1286 = vmatpush1.bf16.msra.mxu0 0
  %1287 = vmatprep.subr.bf16.mxu0 0
  %1288 = vmatpush1.bf16.msra.mxu0 0
  %1289 = vmatprep.subr.bf16.mxu0 0
  %1290 = vmatpush1.bf16.msra.mxu0 0
  %1291 = vmatprep.subr.bf16.mxu0 0
  %1292 = vmatpush1.bf16.msra.mxu0 0
  %1293 = vmatprep.subr.bf16.mxu0 0
  %1294 = vmatpush1.bf16.msra.mxu0 0
  %1295 = vmatprep.subr.bf16.mxu0 0
  %1296 = vmatpush1.bf16.msra.mxu0 %v892
  %1297 = vmatprep.subr.bf16.mxu0 0
  %1298 = vmatpush1.bf16.msra.mxu0 %v891
  %1299 = vmatprep.subr.bf16.mxu0 0
  %1300 = vmatpush2.bf16.msra.mxu0 0
  %1301 = vmatprep.subr.bf16.mxu0 0
  %1302 = vmatpush2.bf16.msra.mxu0 0
  %1303 = vmatprep.subr.bf16.mxu0 0
  %1304 = vmatpush2.bf16.msra.mxu0 0
  %1305 = vmatprep.subr.bf16.mxu0 0
  %1306 = vmatpush2.bf16.msra.mxu0 0
  %1307 = vmatprep.subr.bf16.mxu0 0
  %1308 = vmatpush2.bf16.msra.mxu0 0
  %1309 = vmatprep.subr.bf16.mxu0 0
  %1310 = vmatpush2.bf16.msra.mxu0 0
  %1311 = vmatprep.subr.bf16.mxu0 0
  %1312 = vmatpush2.bf16.msra.mxu0 0
  %1313 = vmatprep.subr.bf16.mxu0 0
  %1314 = vmatpush2.bf16.msra.mxu0 0
  %1315 = vmatprep.mubr.bf16.mxu0 0
  %1316 = vmatmul.mubr.bf16.gmra.mxu0 %v1281
  %v1317 = vpop.f32.mrf.mxu0
  %v1318 = vadd.f32 %v778, %v1317
  %v1319 = vpop.f32.mrf.mxu0
  %v1320 = vpop.f32.mrf.mxu0
  %v1321 = vpop.f32.mrf.mxu0
  %1322 = vdwg.mxu0
  %v1323 = vxor.u32 %v1318, 2147483648
  %v1324 = vmul.f32 %v1323, 1.442695
  %v1325 = vpow.pop %v1324
  %v1326 = vadd.f32 %v1325, 1.0
  %v1327 = vrcp.pop %v1326
  %v1328 = vmul.f32 1.0, %v1327
  %v1329 = vtanh.pop %v1318
  %v1330 = vmul.f32 %v1328, %v1263
  %1332 = vrot.lane.b32.xlu0 %v1329, 64
  %v1333 = vpop.permute.xlu0 %1332
  %v1335 = vmul.f32 %v1328, %v1333
  %1337 = vrot.lane.b32.xlu0 %v1335, 32
  %v1338 = vpop.permute.xlu0 %1337
  %v1340 = vadd.f32 %v1330, %v1338
  %v1341 = vtanh.pop %v1340
  %1343 = vrot.lane.b32.xlu0 %v1341, 64
  %v1344 = vpop.permute.xlu0 %1343
  %v1346 = vmul.f32 %v1328, %v1344
  %1348 = vrot.lane.b32.xlu0 %v1346, 32
  %v1349 = vpop.permute.xlu0 %1348
  %s1351 = scalar_lea.vmem [#allocation3], 48
  %1352 = vst.msk [vmem:[%s1351] sm:$0xff] %vm182, %v1349
  %v1353 = vpack.c.bf16 %v1346, %v1346
  %1355 = vrot.lane.b32.xlu0 %v1353, 32
  %v1356 = vpop.permute.xlu0 %1355
  %v1358 = vsel %vm182, %v1356, 0
  %1360 = vmatprep.subr.bf16.mxu0 0
  %1361 = vmatpush1.bf16.msra.mxu0 0
  %1362 = vmatprep.subr.bf16.mxu0 0
  %1363 = vmatpush1.bf16.msra.mxu0 0
  %1364 = vmatprep.subr.bf16.mxu0 0
  %1365 = vmatpush1.bf16.msra.mxu0 0
  %1366 = vmatprep.subr.bf16.mxu0 0
  %1367 = vmatpush1.bf16.msra.mxu0 0
  %1368 = vmatprep.subr.bf16.mxu0 0
  %1369 = vmatpush1.bf16.msra.mxu0 0
  %1370 = vmatprep.subr.bf16.mxu0 0
  %1371 = vmatpush1.bf16.msra.mxu0 0
  %1372 = vmatprep.subr.bf16.mxu0 0
  %1373 = vmatpush1.bf16.msra.mxu0 %v892
  %1374 = vmatprep.subr.bf16.mxu0 0
  %1375 = vmatpush1.bf16.msra.mxu0 %v891
  %1376 = vmatprep.subr.bf16.mxu0 0
  %1377 = vmatpush2.bf16.msra.mxu0 0
  %1378 = vmatprep.subr.bf16.mxu0 0
  %1379 = vmatpush2.bf16.msra.mxu0 0
  %1380 = vmatprep.subr.bf16.mxu0 0
  %1381 = vmatpush2.bf16.msra.mxu0 0
  %1382 = vmatprep.subr.bf16.mxu0 0
  %1383 = vmatpush2.bf16.msra.mxu0 0
  %1384 = vmatprep.subr.bf16.mxu0 0
  %1385 = vmatpush2.bf16.msra.mxu0 0
  %1386 = vmatprep.subr.bf16.mxu0 0
  %1387 = vmatpush2.bf16.msra.mxu0 0
  %1388 = vmatprep.subr.bf16.mxu0 0
  %1389 = vmatpush2.bf16.msra.mxu0 0
  %1390 = vmatprep.subr.bf16.mxu0 0
  %1391 = vmatpush2.bf16.msra.mxu0 0
  %1392 = vmatprep.mubr.bf16.mxu0 0
  %1393 = vmatmul.mubr.bf16.gmra.mxu0 %v1358
  %v1394 = vpop.f32.mrf.mxu0
  %v1395 = vadd.f32 %v778, %v1394
  %v1396 = vpop.f32.mrf.mxu0
  %v1397 = vpop.f32.mrf.mxu0
  %v1398 = vpop.f32.mrf.mxu0
  %1399 = vdwg.mxu0
  %v1400 = vxor.u32 %v1395, 2147483648
  %v1401 = vmul.f32 %v1400, 1.442695
  %v1402 = vpow.pop %v1401
  %v1403 = vadd.f32 %v1402, 1.0
  %v1404 = vrcp.pop %v1403
  %v1405 = vmul.f32 1.0, %v1404
  %v1406 = vtanh.pop %v1395
  %v1407 = vmul.f32 %v1405, %v1340
  %1409 = vrot.lane.b32.xlu0 %v1406, 64
  %v1410 = vpop.permute.xlu0 %1409
  %v1412 = vmul.f32 %v1405, %v1410
  %1414 = vrot.lane.b32.xlu0 %v1412, 32
  %v1415 = vpop.permute.xlu0 %1414
  %v1417 = vadd.f32 %v1407, %v1415
  %v1418 = vtanh.pop %v1417
  %1420 = vrot.lane.b32.xlu0 %v1418, 64
  %v1421 = vpop.permute.xlu0 %1420
  %v1423 = vmul.f32 %v1405, %v1421
  %1425 = vrot.lane.b32.xlu0 %v1423, 32
  %v1426 = vpop.permute.xlu0 %1425
  %s1428 = scalar_lea.vmem [#allocation3], 56
  %1429 = vst.msk [vmem:[%s1428] sm:$0xff] %vm182, %v1426
  %v1430 = vld [vmem:[#allocation3] sm:$0xff]
  %v1431 = vld [vmem:[#allocation3 + $0x8] sm:$0xff]
  %v1432 = vld [vmem:[#allocation3 + $0x10] sm:$0xff]
  %v1433 = vld [vmem:[#allocation3 + $0x18] sm:$0xff]
  %v1434 = vld [vmem:[#allocation3 + $0x20] sm:$0xff]
  %v1435 = vld [vmem:[#allocation3 + $0x28] sm:$0xff]
  %v1436 = vld [vmem:[#allocation3 + $0x30] sm:$0xff]
  %v1437 = vld [vmem:[#allocation3 + $0x38] sm:$0xff]
  %v1438 = vpack.c.bf16 %v1431, %v1430
  %v1439 = vpack.c.bf16 %v1433, %v1432
  %v1440 = vpack.c.bf16 %v1435, %v1434
  %v1441 = vpack.c.bf16 %v1437, %v1436
  %v1442 = vld [vmem:[%s8] sm:$0xf]
  %v1443 = vld [vmem:[%s8 + $0x4] sm:$0xf]
  %v1444 = vld [vmem:[%s8 + $0x8] sm:$0xf]
  %v1445 = vld [vmem:[%s8 + $0xc] sm:$0xf]
  %v1446 = vld [vmem:[%s9] sm:$0x1]
  %v1448 = vlaneseq
  %v1449 = vshrl.u32 %v1448, 7
  %v1450 = vsub.s32 0, %v1449
  %v1451 = vrot.slane %v1446, %v1450
  %v1457 = vunpack.c.l.b16 %v1442
  %v1458 = vunpack.c.l.b16 %v1443
  %v1459 = vunpack.c.l.b16 %v1444
  %v1460 = vunpack.c.l.b16 %v1445
  %v1461 = vpack.c.b16 %v1458, %v1457
  %v1462 = vpack.c.b16 %v1460, %v1459
  %v1466 = vsel %vm182, %v1438, 0
  %v1469 = vsel %vm182, %v1439, 0
  %v1472 = vsel %vm182, %v1440, 0
  %v1475 = vsel %vm182, %v1441, 0
  %1477 = vmatprep.subr.bf16.mxu0 0
  %1478 = vmatpush1.bf16.msra.mxu0 0
  %1479 = vmatprep.subr.bf16.mxu0 0
  %1480 = vmatpush1.bf16.msra.mxu0 0
  %1481 = vmatprep.subr.bf16.mxu0 0
  %1482 = vmatpush1.bf16.msra.mxu0 0
  %1483 = vmatprep.subr.bf16.mxu0 0
  %1484 = vmatpush1.bf16.msra.mxu0 0
  %1485 = vmatprep.subr.bf16.mxu0 0
  %1486 = vmatpush1.bf16.msra.mxu0 0
  %1487 = vmatprep.subr.bf16.mxu0 0
  %1488 = vmatpush1.bf16.msra.mxu0 0
  %1489 = vmatprep.subr.bf16.mxu0 0
  %1490 = vmatpush1.bf16.msra.mxu0 %v1462
  %1491 = vmatprep.subr.bf16.mxu0 0
  %1492 = vmatpush1.bf16.msra.mxu0 %v1461
  %1493 = vmatprep.subr.bf16.mxu0 0
  %1494 = vmatpush2.bf16.msra.mxu0 0
  %1495 = vmatprep.subr.bf16.mxu0 0
  %1496 = vmatpush2.bf16.msra.mxu0 0
  %1497 = vmatprep.subr.bf16.mxu0 0
  %1498 = vmatpush2.bf16.msra.mxu0 0
  %1499 = vmatprep.subr.bf16.mxu0 0
  %1500 = vmatpush2.bf16.msra.mxu0 0
  %1501 = vmatprep.subr.bf16.mxu0 0
  %1502 = vmatpush2.bf16.msra.mxu0 0
  %1503 = vmatprep.subr.bf16.mxu0 0
  %1504 = vmatpush2.bf16.msra.mxu0 0
  %1505 = vmatprep.subr.bf16.mxu0 0
  %1506 = vmatpush2.bf16.msra.mxu0 0
  %1507 = vmatprep.subr.bf16.mxu0 0
  %1508 = vmatpush2.bf16.msra.mxu0 0
  %1509 = vmatprep.mubr.bf16.mxu0 0
  %1510 = vmatmul.mubr.bf16.gmra.mxu0 %v1466
  %v1511 = vpop.f32.mrf.mxu0
  %v1512 = vadd.f32 %v1451, %v1511
  %v1513 = vpop.f32.mrf.mxu0
  %v1514 = vpop.f32.mrf.mxu0
  %v1515 = vadd.f32 %v1451, %v1514
  %v1516 = vpop.f32.mrf.mxu0
  %1517 = vmatprep.mubr.bf16.mxu0 0
  %1518 = vmatmul.mubr.bf16.gmra.mxu0 %v1469
  %v1519 = vpop.f32.mrf.mxu0
  %v1520 = vadd.f32 %v1451, %v1519
  %v1521 = vpop.f32.mrf.mxu0
  %v1522 = vpop.f32.mrf.mxu0
  %v1523 = vadd.f32 %v1451, %v1522
  %v1524 = vpop.f32.mrf.mxu0
  %1525 = vmatprep.mubr.bf16.mxu0 0
  %1526 = vmatmul.mubr.bf16.gmra.mxu0 %v1472
  %v1527 = vpop.f32.mrf.mxu0
  %v1528 = vadd.f32 %v1451, %v1527
  %v1529 = vpop.f32.mrf.mxu0
  %v1530 = vpop.f32.mrf.mxu0
  %v1531 = vadd.f32 %v1451, %v1530
  %v1532 = vpop.f32.mrf.mxu0
  %1533 = vmatprep.mubr.bf16.mxu0 0
  %1534 = vmatmul.mubr.bf16.gmra.mxu0 %v1475
  %v1535 = vpop.f32.mrf.mxu0
  %v1536 = vadd.f32 %v1451, %v1535
  %v1537 = vpop.f32.mrf.mxu0
  %v1538 = vpop.f32.mrf.mxu0
  %v1539 = vadd.f32 %v1451, %v1538
  %v1540 = vpop.f32.mrf.mxu0
  %1541 = vdwg.mxu0
  %1542 = vst.msk [vmem:[%s10] sm:$0xff] %vm79, %v1512
  %1543 = vst.msk [vmem:[%s10 + $0x8] sm:$0xff] %vm79, %v1515
  %1544 = vst.msk [vmem:[%s10 + $0x10] sm:$0xff] %vm79, %v1520
  %1545 = vst.msk [vmem:[%s10 + $0x18] sm:$0xff] %vm79, %v1523
  %1546 = vst.msk [vmem:[%s10 + $0x20] sm:$0xff] %vm79, %v1528
  %1547 = vst.msk [vmem:[%s10 + $0x28] sm:$0xff] %vm79, %v1531
  %1548 = vst.msk [vmem:[%s10 + $0x30] sm:$0xff] %vm79, %v1536
  %1549 = vst.msk [vmem:[%s10 + $0x38] sm:$0xff] %vm79, %v1539
  // Predicated region
  $region42: #{_lstm_gen_forward.1} parent=0 // pred_check
    _
  $region43: #{_lstm_gen_forward.1} parent=0 // pred_check_branch
    %1551 = sbr.rel (0) target = $region45
  $region44: #{_lstm_gen_forward.1} parent=0 // pred_region
    _
  $region45: #{_lstm_gen_forward.1} parent=0 // pred_fallthru
    _
  // Predicated region
  $region46: #{_lstm_gen_forward.1} parent=0 // pred_check
    _
  $region47: #{_lstm_gen_forward.1} parent=0 // pred_check_branch
    %1553 = sbr.rel (0) target = $region49
  $region48: #{_lstm_gen_forward.1} parent=0 // pred_region
    _
  $region49: #{_lstm_gen_forward.1} parent=0 // pred_fallthru
    _

</llo_original>
